<compile_context>
chip_gen: v7x
topology: tpu7x:2x2x1
jax: 0.10.0
libtpu: 0.0.40
codegen_flags: <defaults>
</compile_context>

<pallas_src>
import functools

import jax
import jax.numpy as jnp
from jax.experimental import pallas as pl
from jax.experimental.pallas import tpu as pltpu


def _spatial_gate_kernel(bias_ref, w_ref, x_ref, o_ref, *, C, W, HW, K, Nb):
    """One block of Nb images per grid step, all in lane-dense (C, H*W) layout.

    bias_ref : SMEM f32[1]           folded BatchNorm shift
    w_ref    : VMEM (K*K, 2, HW)     per-tap, per-position BN-folded weights
                                     (channel 0 = max-pool, 1 = mean-pool);
                                     zero wherever the tap would read padding.
    x_ref    : VMEM (Nb, C, HW)      input images (lane-dense blocks)
    o_ref    : VMEM (Nb, C, HW)      gated output  x * sigmoid(conv(pool(x)))
    """
    P = (K - 1) // 2
    bias = bias_ref[0]
    inv_c = 1.0 / C

    for b in range(Nb):                                 # static unroll, Nb small
        xb = x_ref[b]                                    # (C, HW) lane-dense load

        # ---- ChannelPool: max & mean over channels (VPU / XLU reductions) ----
        mx = jnp.max(xb, axis=0, keepdims=True)          # (1, HW)
        mn = jnp.sum(xb, axis=0, keepdims=True) * inv_c  # (1, HW)
        pooled = jnp.concatenate([mx, mn], axis=0)       # (2, HW): ch0=max, ch1=mean

        # ---- 7x7 conv, Cin=2 -> Cout=1, on the flattened spatial axis ----
        # For tap (ky, kx) the input element feeding output position p = y*W+x
        # is p + (ky-P)*W + (kx-P); out-of-image (padding) positions carry a
        # zero in the precomputed weight map, so a circular roll is safe.
        # Rolls go to the XLU slot and dual-issue with the VALU MACs.
        accs = [jnp.zeros((2, HW), jnp.float32) for _ in range(4)]
        for ky in range(K):
            for kx in range(K):
                t = ky * K + kx
                delta = (ky - P) * W + (kx - P)
                shift = (-delta) % HW
                rolled = pooled if shift == 0 else pltpu.roll(pooled, shift=shift, axis=1)
                accs[t % 4] = accs[t % 4] + rolled * w_ref[t]
        acc = (accs[0] + accs[1]) + (accs[2] + accs[3])               # (2, HW)
        z = jnp.sum(acc, axis=0, keepdims=True) + bias                # (1, HW)

        # ---- folded BN shift already added; no ReLU; sigmoid gate ----
        gate = 1.0 / (1.0 + jnp.exp(-z))          # EUP exp; exact divide (TODO)

        # ---- gate the input: one vectorized multiply + lane-dense store ----
        o_ref[b] = (xb * gate).astype(o_ref.dtype)


def _pick_images_per_block(n, per_image_bytes, budget_bytes):
    """Largest divisor of n whose double-buffered in+out blocks fit the budget,
    preferring >=2 grid steps so both v7x TensorCores get work."""
    divisors = [d for d in range(1, n + 1) if n % d == 0]
    fits = [d for d in divisors if 4 * d * per_image_bytes <= budget_bytes]
    if not fits:
        return 1
    multi_step = [d for d in fits if n // d >= 2]
    return max(multi_step) if multi_step else max(fits)


def spatial_gate(x, conv_w, gamma, beta, running_mean, running_var, *, eps=1e-5):
    """SpatialGate forward: x * sigmoid(BN(conv7x7(ChannelPool(x)))).

    x       : (N, C, H, W) float32
    conv_w  : (1, 2, K, K) conv weight (OIHW), bias=False
    gamma/beta/running_mean/running_var : (1,) BatchNorm2d(1) params (eval mode)
    """
    N, C, H, W = x.shape
    Cout, Cin2, KH, KW = conv_w.shape
    assert Cout == 1 and Cin2 == 2 and KH == KW, (conv_w.shape,)
    K = KH
    P = (K - 1) // 2
    KK = K * K
    HW = H * W

    x = x.astype(jnp.float32)

    # --- fold BN (eval mode) into the conv: scale -> weights, shift -> bias ---
    scale = gamma.astype(jnp.float32) / jnp.sqrt(running_var.astype(jnp.float32) + eps)
    shift = beta.astype(jnp.float32) - running_mean.astype(jnp.float32) * scale
    w_folded = conv_w[0].astype(jnp.float32) * scale[0]               # (2, K, K)

    # --- per-tap, per-position weights with the zero-padding mask folded in ---
    rr = jnp.arange(H)[:, None]
    cc = jnp.arange(W)[None, :]
    masks = []
    for ky in range(K):
        for kx in range(K):
            oy, ox = ky - P, kx - P
            m = ((rr + oy >= 0) & (rr + oy < H) &
                 (cc + ox >= 0) & (cc + ox < W))
            masks.append(m.reshape(HW))
    mask = jnp.stack(masks).astype(jnp.float32)                       # (KK, HW)
    w_taps = w_folded.reshape(2, KK).T                                # (KK, 2)
    wmap = w_taps[:, :, None] * mask[:, None, :]                      # (KK, 2, HW)
    bias = shift.reshape(1).astype(jnp.float32)                       # (1,)

    # --- lane-dense HBM views (free reshapes) ---
    x_flat = x.reshape(N, C, HW)

    # --- images per grid step + explicit VMEM budget (v5e default is 16 MiB,
    #     v7x physical is 64 MiB) ---
    per_image_bytes = C * HW * 4
    nb = _pick_images_per_block(N, per_image_bytes, budget_bytes=8 * 1024 * 1024)
    wmap_vmem_bytes = KK * 8 * (pl.cdiv(HW, 128) * 128) * 4           # (8,128)-tiled
    vmem_needed = 2 * (wmap_vmem_bytes + 4 * nb * per_image_bytes) + (2 << 20)
    vmem_limit = int(min(64 * 1024 * 1024, max(16 * 1024 * 1024, vmem_needed)))

    kernel = functools.partial(_spatial_gate_kernel, C=C, W=W, HW=HW, K=K, Nb=nb)

    out_flat = pl.pallas_call(
        kernel,
        out_shape=jax.ShapeDtypeStruct((N, C, HW), jnp.float32),
        grid_spec=pltpu.PrefetchScalarGridSpec(
            num_scalar_prefetch=0,
            grid=(N // nb,),
            in_specs=[
                pl.BlockSpec(memory_space=pltpu.MemorySpace.SMEM),     # bias (1,)
                pl.BlockSpec((KK, 2, HW), lambda n: (0, 0, 0)),        # wmap (resident)
                pl.BlockSpec((nb, C, HW), lambda n: (n, 0, 0)),        # x
            ],
            out_specs=pl.BlockSpec((nb, C, HW), lambda n: (n, 0, 0)),
        ),
        compiler_params=pltpu.CompilerParams(
            dimension_semantics=("parallel",),
            vmem_limit_bytes=vmem_limit),
    )(bias, wmap, x_flat)
    return out_flat.reshape(N, C, H, W)


def _reference(x, conv_w, gamma, beta, mean, var, *, eps=1e-5):
    """Pure-JAX reference matching the PyTorch SpatialGate (eval mode)."""
    mx = jnp.max(x, axis=1, keepdims=True)
    mn = jnp.mean(x, axis=1, keepdims=True)
    pooled = jnp.concatenate([mx, mn], axis=1)                        # (N,2,H,W)
    K = conv_w.shape[-1]
    pad = (K - 1) // 2
    y = jax.lax.conv_general_dilated(
        pooled, conv_w, window_strides=(1, 1),
        padding=[(pad, pad), (pad, pad)],
        dimension_numbers=("NCHW", "OIHW", "NCHW"))
    scale = (gamma / jnp.sqrt(var + eps)).reshape(1, -1, 1, 1)
    shift = (beta - mean * gamma / jnp.sqrt(var + eps)).reshape(1, -1, 1, 1)
    gate = jax.nn.sigmoid(y * scale + shift)
    return x * gate


if __name__ == "__main__":
    # SpatialGate on x of shape (N=2, C=4, H=16, W=16); conv is (1, 2, 7, 7).
    N, C, H, W = 2, 4, 16, 16
    K = 7

    key = jax.random.PRNGKey(0)
    k_x, k_w, k_g, k_b, k_m, k_v = jax.random.split(key, 6)
    x = jax.random.normal(k_x, (N, C, H, W), dtype=jnp.float32)
    conv_w = jax.random.normal(k_w, (1, 2, K, K), dtype=jnp.float32) * 0.1
    gamma = 1.0 + 0.1 * jax.random.normal(k_g, (1,), dtype=jnp.float32)
    beta = 0.1 * jax.random.normal(k_b, (1,), dtype=jnp.float32)
    running_mean = 0.1 * jax.random.normal(k_m, (1,), dtype=jnp.float32)
    running_var = jnp.abs(jax.random.normal(k_v, (1,), dtype=jnp.float32)) + 0.5

    out = spatial_gate(x, conv_w, gamma, beta, running_mean, running_var)
    out = jax.block_until_ready(out)

    ref = _reference(x, conv_w, gamma, beta, running_mean, running_var)
    assert out.shape == (N, C, H, W), out.shape
    err = float(jnp.max(jnp.abs(out - ref)))
    assert err < 2e-4, err

    print("KERNEL_OK")
</pallas_src>

<mosaic_0001>
module attributes {stable_mosaic.version = 11 : i64} {
  func.func @_spatial_gate_kernel(%arg0: i32, %arg1: memref<1xf32, #tpu.memory_space<smem>>, %arg2: memref<49x2x256xf32, #tpu.memory_space<vmem>>, %arg3: memref<1x4x256xf32, #tpu.memory_space<vmem>>, %arg4: memref<1x4x256xf32, #tpu.memory_space<vmem>>) attributes {dimension_semantics = [#tpu.dimension_semantics<parallel>], iteration_bounds = array<i64: 2>, scalar_prefetch = 0 : i64, scratch_operands = 0 : i64, tpu.core_type = #tpu.core_type<tc>, window_params = [{transform_indices = @transform_0, window_bounds = array<i64: 1>}, {pipeline_mode = #tpu.pipeline_mode<synchronous>, transform_indices = @transform_1, window_bounds = array<i64: 49, 2, 256>}, {transform_indices = @transform_2, window_bounds = array<i64: 1, 4, 256>}, {transform_indices = @transform_3, window_bounds = array<i64: 1, 4, 256>}]} {
    %c0 = arith.constant 0 : index
    %0 = memref.load %arg1[%c0] : memref<1xf32, #tpu.memory_space<smem>>
    %c0_0 = arith.constant 0 : index
    %c0_1 = arith.constant 0 : index
    %c0_2 = arith.constant 0 : index
    %1 = vector.load %arg3[%c0_0, %c0_1, %c0_2] : memref<1x4x256xf32, #tpu.memory_space<vmem>>, vector<1x4x256xf32>
    %2 = vector.shape_cast %1 : vector<1x4x256xf32> to vector<4x256xf32>
    %cst = arith.constant dense<0xFF800000> : vector<256xf32>
    %3 = vector.multi_reduction <maximumf>, %2, %cst [0] : vector<4x256xf32> to vector<256xf32>
    %4 = vector.shape_cast %3 : vector<256xf32> to vector<1x256xf32>
    %cst_3 = arith.constant dense<0.000000e+00> : vector<256xf32>
    %5 = vector.multi_reduction <add>, %2, %cst_3 [0] : vector<4x256xf32> to vector<256xf32>
    %6 = vector.shape_cast %5 : vector<256xf32> to vector<1x256xf32>
    %cst_4 = arith.constant 2.500000e-01 : f32
    %7 = vector.broadcast %cst_4 : f32 to vector<1x256xf32>
    %8 = arith.mulf %6, %7 : vector<1x256xf32>
    %9 = tpu.concatenate %4, %8 in 0 : vector<1x256xf32>, vector<1x256xf32> -> vector<2x256xf32>
    %cst_5 = arith.constant 0.000000e+00 : f32
    %10 = vector.broadcast %cst_5 : f32 to vector<2x256xf32>
    %cst_6 = arith.constant 0.000000e+00 : f32
    %11 = vector.broadcast %cst_6 : f32 to vector<2x256xf32>
    %cst_7 = arith.constant 0.000000e+00 : f32
    %12 = vector.broadcast %cst_7 : f32 to vector<2x256xf32>
    %cst_8 = arith.constant 0.000000e+00 : f32
    %13 = vector.broadcast %cst_8 : f32 to vector<2x256xf32>
    %c51_i32 = arith.constant 51 : i32
    %14 = tpu.dynamic_rotate %9 by %c51_i32 dim 1 : vector<2x256xf32>, i32 -> vector<2x256xf32>
    %c0_9 = arith.constant 0 : index
    %c0_10 = arith.constant 0 : index
    %c0_11 = arith.constant 0 : index
    %15 = vector.load %arg2[%c0_9, %c0_10, %c0_11] : memref<49x2x256xf32, #tpu.memory_space<vmem>>, vector<1x2x256xf32>
    %16 = vector.shape_cast %15 : vector<1x2x256xf32> to vector<2x256xf32>
    %17 = arith.mulf %14, %16 : vector<2x256xf32>
    %18 = arith.addf %10, %17 : vector<2x256xf32>
    %c50_i32 = arith.constant 50 : i32
    %19 = tpu.dynamic_rotate %9 by %c50_i32 dim 1 : vector<2x256xf32>, i32 -> vector<2x256xf32>
    %c1 = arith.constant 1 : index
    %c0_12 = arith.constant 0 : index
    %c0_13 = arith.constant 0 : index
    %20 = vector.load %arg2[%c1, %c0_12, %c0_13] : memref<49x2x256xf32, #tpu.memory_space<vmem>>, vector<1x2x256xf32>
    %21 = vector.shape_cast %20 : vector<1x2x256xf32> to vector<2x256xf32>
    %22 = arith.mulf %19, %21 : vector<2x256xf32>
    %23 = arith.addf %11, %22 : vector<2x256xf32>
    %c49_i32 = arith.constant 49 : i32
    %24 = tpu.dynamic_rotate %9 by %c49_i32 dim 1 : vector<2x256xf32>, i32 -> vector<2x256xf32>
    %c2 = arith.constant 2 : index
    %c0_14 = arith.constant 0 : index
    %c0_15 = arith.constant 0 : index
    %25 = vector.load %arg2[%c2, %c0_14, %c0_15] : memref<49x2x256xf32, #tpu.memory_space<vmem>>, vector<1x2x256xf32>
    %26 = vector.shape_cast %25 : vector<1x2x256xf32> to vector<2x256xf32>
    %27 = arith.mulf %24, %26 : vector<2x256xf32>
    %28 = arith.addf %12, %27 : vector<2x256xf32>
    %c48_i32 = arith.constant 48 : i32
    %29 = tpu.dynamic_rotate %9 by %c48_i32 dim 1 : vector<2x256xf32>, i32 -> vector<2x256xf32>
    %c3 = arith.constant 3 : index
    %c0_16 = arith.constant 0 : index
    %c0_17 = arith.constant 0 : index
    %30 = vector.load %arg2[%c3, %c0_16, %c0_17] : memref<49x2x256xf32, #tpu.memory_space<vmem>>, vector<1x2x256xf32>
    %31 = vector.shape_cast %30 : vector<1x2x256xf32> to vector<2x256xf32>
    %32 = arith.mulf %29, %31 : vector<2x256xf32>
    %33 = arith.addf %13, %32 : vector<2x256xf32>
    %c47_i32 = arith.constant 47 : i32
    %34 = tpu.dynamic_rotate %9 by %c47_i32 dim 1 : vector<2x256xf32>, i32 -> vector<2x256xf32>
    %c4 = arith.constant 4 : index
    %c0_18 = arith.constant 0 : index
    %c0_19 = arith.constant 0 : index
    %35 = vector.load %arg2[%c4, %c0_18, %c0_19] : memref<49x2x256xf32, #tpu.memory_space<vmem>>, vector<1x2x256xf32>
    %36 = vector.shape_cast %35 : vector<1x2x256xf32> to vector<2x256xf32>
    %37 = arith.mulf %34, %36 : vector<2x256xf32>
    %38 = arith.addf %18, %37 : vector<2x256xf32>
    %c46_i32 = arith.constant 46 : i32
    %39 = tpu.dynamic_rotate %9 by %c46_i32 dim 1 : vector<2x256xf32>, i32 -> vector<2x256xf32>
    %c5 = arith.constant 5 : index
    %c0_20 = arith.constant 0 : index
    %c0_21 = arith.constant 0 : index
    %40 = vector.load %arg2[%c5, %c0_20, %c0_21] : memref<49x2x256xf32, #tpu.memory_space<vmem>>, vector<1x2x256xf32>
    %41 = vector.shape_cast %40 : vector<1x2x256xf32> to vector<2x256xf32>
    %42 = arith.mulf %39, %41 : vector<2x256xf32>
    %43 = arith.addf %23, %42 : vector<2x256xf32>
    %c45_i32 = arith.constant 45 : i32
    %44 = tpu.dynamic_rotate %9 by %c45_i32 dim 1 : vector<2x256xf32>, i32 -> vector<2x256xf32>
    %c6 = arith.constant 6 : index
    %c0_22 = arith.constant 0 : index
    %c0_23 = arith.constant 0 : index
    %45 = vector.load %arg2[%c6, %c0_22, %c0_23] : memref<49x2x256xf32, #tpu.memory_space<vmem>>, vector<1x2x256xf32>
    %46 = vector.shape_cast %45 : vector<1x2x256xf32> to vector<2x256xf32>
    %47 = arith.mulf %44, %46 : vector<2x256xf32>
    %48 = arith.addf %28, %47 : vector<2x256xf32>
    %c35_i32 = arith.constant 35 : i32
    %49 = tpu.dynamic_rotate %9 by %c35_i32 dim 1 : vector<2x256xf32>, i32 -> vector<2x256xf32>
    %c7 = arith.constant 7 : index
    %c0_24 = arith.constant 0 : index
    %c0_25 = arith.constant 0 : index
    %50 = vector.load %arg2[%c7, %c0_24, %c0_25] : memref<49x2x256xf32, #tpu.memory_space<vmem>>, vector<1x2x256xf32>
    %51 = vector.shape_cast %50 : vector<1x2x256xf32> to vector<2x256xf32>
    %52 = arith.mulf %49, %51 : vector<2x256xf32>
    %53 = arith.addf %33, %52 : vector<2x256xf32>
    %c34_i32 = arith.constant 34 : i32
    %54 = tpu.dynamic_rotate %9 by %c34_i32 dim 1 : vector<2x256xf32>, i32 -> vector<2x256xf32>
    %c8 = arith.constant 8 : index
    %c0_26 = arith.constant 0 : index
    %c0_27 = arith.constant 0 : index
    %55 = vector.load %arg2[%c8, %c0_26, %c0_27] : memref<49x2x256xf32, #tpu.memory_space<vmem>>, vector<1x2x256xf32>
    %56 = vector.shape_cast %55 : vector<1x2x256xf32> to vector<2x256xf32>
    %57 = arith.mulf %54, %56 : vector<2x256xf32>
    %58 = arith.addf %38, %57 : vector<2x256xf32>
    %c33_i32 = arith.constant 33 : i32
    %59 = tpu.dynamic_rotate %9 by %c33_i32 dim 1 : vector<2x256xf32>, i32 -> vector<2x256xf32>
    %c9 = arith.constant 9 : index
    %c0_28 = arith.constant 0 : index
    %c0_29 = arith.constant 0 : index
    %60 = vector.load %arg2[%c9, %c0_28, %c0_29] : memref<49x2x256xf32, #tpu.memory_space<vmem>>, vector<1x2x256xf32>
    %61 = vector.shape_cast %60 : vector<1x2x256xf32> to vector<2x256xf32>
    %62 = arith.mulf %59, %61 : vector<2x256xf32>
    %63 = arith.addf %43, %62 : vector<2x256xf32>
    %c32_i32 = arith.constant 32 : i32
    %64 = tpu.dynamic_rotate %9 by %c32_i32 dim 1 : vector<2x256xf32>, i32 -> vector<2x256xf32>
    %c10 = arith.constant 10 : index
    %c0_30 = arith.constant 0 : index
    %c0_31 = arith.constant 0 : index
    %65 = vector.load %arg2[%c10, %c0_30, %c0_31] : memref<49x2x256xf32, #tpu.memory_space<vmem>>, vector<1x2x256xf32>
    %66 = vector.shape_cast %65 : vector<1x2x256xf32> to vector<2x256xf32>
    %67 = arith.mulf %64, %66 : vector<2x256xf32>
    %68 = arith.addf %48, %67 : vector<2x256xf32>
    %c31_i32 = arith.constant 31 : i32
    %69 = tpu.dynamic_rotate %9 by %c31_i32 dim 1 : vector<2x256xf32>, i32 -> vector<2x256xf32>
    %c11 = arith.constant 11 : index
    %c0_32 = arith.constant 0 : index
    %c0_33 = arith.constant 0 : index
    %70 = vector.load %arg2[%c11, %c0_32, %c0_33] : memref<49x2x256xf32, #tpu.memory_space<vmem>>, vector<1x2x256xf32>
    %71 = vector.shape_cast %70 : vector<1x2x256xf32> to vector<2x256xf32>
    %72 = arith.mulf %69, %71 : vector<2x256xf32>
    %73 = arith.addf %53, %72 : vector<2x256xf32>
    %c30_i32 = arith.constant 30 : i32
    %74 = tpu.dynamic_rotate %9 by %c30_i32 dim 1 : vector<2x256xf32>, i32 -> vector<2x256xf32>
    %c12 = arith.constant 12 : index
    %c0_34 = arith.constant 0 : index
    %c0_35 = arith.constant 0 : index
    %75 = vector.load %arg2[%c12, %c0_34, %c0_35] : memref<49x2x256xf32, #tpu.memory_space<vmem>>, vector<1x2x256xf32>
    %76 = vector.shape_cast %75 : vector<1x2x256xf32> to vector<2x256xf32>
    %77 = arith.mulf %74, %76 : vector<2x256xf32>
    %78 = arith.addf %58, %77 : vector<2x256xf32>
    %c29_i32 = arith.constant 29 : i32
    %79 = tpu.dynamic_rotate %9 by %c29_i32 dim 1 : vector<2x256xf32>, i32 -> vector<2x256xf32>
    %c13 = arith.constant 13 : index
    %c0_36 = arith.constant 0 : index
    %c0_37 = arith.constant 0 : index
    %80 = vector.load %arg2[%c13, %c0_36, %c0_37] : memref<49x2x256xf32, #tpu.memory_space<vmem>>, vector<1x2x256xf32>
    %81 = vector.shape_cast %80 : vector<1x2x256xf32> to vector<2x256xf32>
    %82 = arith.mulf %79, %81 : vector<2x256xf32>
    %83 = arith.addf %63, %82 : vector<2x256xf32>
    %c19_i32 = arith.constant 19 : i32
    %84 = tpu.dynamic_rotate %9 by %c19_i32 dim 1 : vector<2x256xf32>, i32 -> vector<2x256xf32>
    %c14 = arith.constant 14 : index
    %c0_38 = arith.constant 0 : index
    %c0_39 = arith.constant 0 : index
    %85 = vector.load %arg2[%c14, %c0_38, %c0_39] : memref<49x2x256xf32, #tpu.memory_space<vmem>>, vector<1x2x256xf32>
    %86 = vector.shape_cast %85 : vector<1x2x256xf32> to vector<2x256xf32>
    %87 = arith.mulf %84, %86 : vector<2x256xf32>
    %88 = arith.addf %68, %87 : vector<2x256xf32>
    %c18_i32 = arith.constant 18 : i32
    %89 = tpu.dynamic_rotate %9 by %c18_i32 dim 1 : vector<2x256xf32>, i32 -> vector<2x256xf32>
    %c15 = arith.constant 15 : index
    %c0_40 = arith.constant 0 : index
    %c0_41 = arith.constant 0 : index
    %90 = vector.load %arg2[%c15, %c0_40, %c0_41] : memref<49x2x256xf32, #tpu.memory_space<vmem>>, vector<1x2x256xf32>
    %91 = vector.shape_cast %90 : vector<1x2x256xf32> to vector<2x256xf32>
    %92 = arith.mulf %89, %91 : vector<2x256xf32>
    %93 = arith.addf %73, %92 : vector<2x256xf32>
    %c17_i32 = arith.constant 17 : i32
    %94 = tpu.dynamic_rotate %9 by %c17_i32 dim 1 : vector<2x256xf32>, i32 -> vector<2x256xf32>
    %c16 = arith.constant 16 : index
    %c0_42 = arith.constant 0 : index
    %c0_43 = arith.constant 0 : index
    %95 = vector.load %arg2[%c16, %c0_42, %c0_43] : memref<49x2x256xf32, #tpu.memory_space<vmem>>, vector<1x2x256xf32>
    %96 = vector.shape_cast %95 : vector<1x2x256xf32> to vector<2x256xf32>
    %97 = arith.mulf %94, %96 : vector<2x256xf32>
    %98 = arith.addf %78, %97 : vector<2x256xf32>
    %c16_i32 = arith.constant 16 : i32
    %99 = tpu.dynamic_rotate %9 by %c16_i32 dim 1 : vector<2x256xf32>, i32 -> vector<2x256xf32>
    %c17 = arith.constant 17 : index
    %c0_44 = arith.constant 0 : index
    %c0_45 = arith.constant 0 : index
    %100 = vector.load %arg2[%c17, %c0_44, %c0_45] : memref<49x2x256xf32, #tpu.memory_space<vmem>>, vector<1x2x256xf32>
    %101 = vector.shape_cast %100 : vector<1x2x256xf32> to vector<2x256xf32>
    %102 = arith.mulf %99, %101 : vector<2x256xf32>
    %103 = arith.addf %83, %102 : vector<2x256xf32>
    %c15_i32 = arith.constant 15 : i32
    %104 = tpu.dynamic_rotate %9 by %c15_i32 dim 1 : vector<2x256xf32>, i32 -> vector<2x256xf32>
    %c18 = arith.constant 18 : index
    %c0_46 = arith.constant 0 : index
    %c0_47 = arith.constant 0 : index
    %105 = vector.load %arg2[%c18, %c0_46, %c0_47] : memref<49x2x256xf32, #tpu.memory_space<vmem>>, vector<1x2x256xf32>
    %106 = vector.shape_cast %105 : vector<1x2x256xf32> to vector<2x256xf32>
    %107 = arith.mulf %104, %106 : vector<2x256xf32>
    %108 = arith.addf %88, %107 : vector<2x256xf32>
    %c14_i32 = arith.constant 14 : i32
    %109 = tpu.dynamic_rotate %9 by %c14_i32 dim 1 : vector<2x256xf32>, i32 -> vector<2x256xf32>
    %c19 = arith.constant 19 : index
    %c0_48 = arith.constant 0 : index
    %c0_49 = arith.constant 0 : index
    %110 = vector.load %arg2[%c19, %c0_48, %c0_49] : memref<49x2x256xf32, #tpu.memory_space<vmem>>, vector<1x2x256xf32>
    %111 = vector.shape_cast %110 : vector<1x2x256xf32> to vector<2x256xf32>
    %112 = arith.mulf %109, %111 : vector<2x256xf32>
    %113 = arith.addf %93, %112 : vector<2x256xf32>
    %c13_i32 = arith.constant 13 : i32
    %114 = tpu.dynamic_rotate %9 by %c13_i32 dim 1 : vector<2x256xf32>, i32 -> vector<2x256xf32>
    %c20 = arith.constant 20 : index
    %c0_50 = arith.constant 0 : index
    %c0_51 = arith.constant 0 : index
    %115 = vector.load %arg2[%c20, %c0_50, %c0_51] : memref<49x2x256xf32, #tpu.memory_space<vmem>>, vector<1x2x256xf32>
    %116 = vector.shape_cast %115 : vector<1x2x256xf32> to vector<2x256xf32>
    %117 = arith.mulf %114, %116 : vector<2x256xf32>
    %118 = arith.addf %98, %117 : vector<2x256xf32>
    %c3_i32 = arith.constant 3 : i32
    %119 = tpu.dynamic_rotate %9 by %c3_i32 dim 1 : vector<2x256xf32>, i32 -> vector<2x256xf32>
    %c21 = arith.constant 21 : index
    %c0_52 = arith.constant 0 : index
    %c0_53 = arith.constant 0 : index
    %120 = vector.load %arg2[%c21, %c0_52, %c0_53] : memref<49x2x256xf32, #tpu.memory_space<vmem>>, vector<1x2x256xf32>
    %121 = vector.shape_cast %120 : vector<1x2x256xf32> to vector<2x256xf32>
    %122 = arith.mulf %119, %121 : vector<2x256xf32>
    %123 = arith.addf %103, %122 : vector<2x256xf32>
    %c2_i32 = arith.constant 2 : i32
    %124 = tpu.dynamic_rotate %9 by %c2_i32 dim 1 : vector<2x256xf32>, i32 -> vector<2x256xf32>
    %c22 = arith.constant 22 : index
    %c0_54 = arith.constant 0 : index
    %c0_55 = arith.constant 0 : index
    %125 = vector.load %arg2[%c22, %c0_54, %c0_55] : memref<49x2x256xf32, #tpu.memory_space<vmem>>, vector<1x2x256xf32>
    %126 = vector.shape_cast %125 : vector<1x2x256xf32> to vector<2x256xf32>
    %127 = arith.mulf %124, %126 : vector<2x256xf32>
    %128 = arith.addf %108, %127 : vector<2x256xf32>
    %c1_i32 = arith.constant 1 : i32
    %129 = tpu.dynamic_rotate %9 by %c1_i32 dim 1 : vector<2x256xf32>, i32 -> vector<2x256xf32>
    %c23 = arith.constant 23 : index
    %c0_56 = arith.constant 0 : index
    %c0_57 = arith.constant 0 : index
    %130 = vector.load %arg2[%c23, %c0_56, %c0_57] : memref<49x2x256xf32, #tpu.memory_space<vmem>>, vector<1x2x256xf32>
    %131 = vector.shape_cast %130 : vector<1x2x256xf32> to vector<2x256xf32>
    %132 = arith.mulf %129, %131 : vector<2x256xf32>
    %133 = arith.addf %113, %132 : vector<2x256xf32>
    %c24 = arith.constant 24 : index
    %c0_58 = arith.constant 0 : index
    %c0_59 = arith.constant 0 : index
    %134 = vector.load %arg2[%c24, %c0_58, %c0_59] : memref<49x2x256xf32, #tpu.memory_space<vmem>>, vector<1x2x256xf32>
    %135 = vector.shape_cast %134 : vector<1x2x256xf32> to vector<2x256xf32>
    %136 = arith.mulf %9, %135 : vector<2x256xf32>
    %137 = arith.addf %118, %136 : vector<2x256xf32>
    %c255_i32 = arith.constant 255 : i32
    %138 = tpu.dynamic_rotate %9 by %c255_i32 dim 1 : vector<2x256xf32>, i32 -> vector<2x256xf32>
    %c25 = arith.constant 25 : index
    %c0_60 = arith.constant 0 : index
    %c0_61 = arith.constant 0 : index
    %139 = vector.load %arg2[%c25, %c0_60, %c0_61] : memref<49x2x256xf32, #tpu.memory_space<vmem>>, vector<1x2x256xf32>
    %140 = vector.shape_cast %139 : vector<1x2x256xf32> to vector<2x256xf32>
    %141 = arith.mulf %138, %140 : vector<2x256xf32>
    %142 = arith.addf %123, %141 : vector<2x256xf32>
    %c254_i32 = arith.constant 254 : i32
    %143 = tpu.dynamic_rotate %9 by %c254_i32 dim 1 : vector<2x256xf32>, i32 -> vector<2x256xf32>
    %c26 = arith.constant 26 : index
    %c0_62 = arith.constant 0 : index
    %c0_63 = arith.constant 0 : index
    %144 = vector.load %arg2[%c26, %c0_62, %c0_63] : memref<49x2x256xf32, #tpu.memory_space<vmem>>, vector<1x2x256xf32>
    %145 = vector.shape_cast %144 : vector<1x2x256xf32> to vector<2x256xf32>
    %146 = arith.mulf %143, %145 : vector<2x256xf32>
    %147 = arith.addf %128, %146 : vector<2x256xf32>
    %c253_i32 = arith.constant 253 : i32
    %148 = tpu.dynamic_rotate %9 by %c253_i32 dim 1 : vector<2x256xf32>, i32 -> vector<2x256xf32>
    %c27 = arith.constant 27 : index
    %c0_64 = arith.constant 0 : index
    %c0_65 = arith.constant 0 : index
    %149 = vector.load %arg2[%c27, %c0_64, %c0_65] : memref<49x2x256xf32, #tpu.memory_space<vmem>>, vector<1x2x256xf32>
    %150 = vector.shape_cast %149 : vector<1x2x256xf32> to vector<2x256xf32>
    %151 = arith.mulf %148, %150 : vector<2x256xf32>
    %152 = arith.addf %133, %151 : vector<2x256xf32>
    %c243_i32 = arith.constant 243 : i32
    %153 = tpu.dynamic_rotate %9 by %c243_i32 dim 1 : vector<2x256xf32>, i32 -> vector<2x256xf32>
    %c28 = arith.constant 28 : index
    %c0_66 = arith.constant 0 : index
    %c0_67 = arith.constant 0 : index
    %154 = vector.load %arg2[%c28, %c0_66, %c0_67] : memref<49x2x256xf32, #tpu.memory_space<vmem>>, vector<1x2x256xf32>
    %155 = vector.shape_cast %154 : vector<1x2x256xf32> to vector<2x256xf32>
    %156 = arith.mulf %153, %155 : vector<2x256xf32>
    %157 = arith.addf %137, %156 : vector<2x256xf32>
    %c242_i32 = arith.constant 242 : i32
    %158 = tpu.dynamic_rotate %9 by %c242_i32 dim 1 : vector<2x256xf32>, i32 -> vector<2x256xf32>
    %c29 = arith.constant 29 : index
    %c0_68 = arith.constant 0 : index
    %c0_69 = arith.constant 0 : index
    %159 = vector.load %arg2[%c29, %c0_68, %c0_69] : memref<49x2x256xf32, #tpu.memory_space<vmem>>, vector<1x2x256xf32>
    %160 = vector.shape_cast %159 : vector<1x2x256xf32> to vector<2x256xf32>
    %161 = arith.mulf %158, %160 : vector<2x256xf32>
    %162 = arith.addf %142, %161 : vector<2x256xf32>
    %c241_i32 = arith.constant 241 : i32
    %163 = tpu.dynamic_rotate %9 by %c241_i32 dim 1 : vector<2x256xf32>, i32 -> vector<2x256xf32>
    %c30 = arith.constant 30 : index
    %c0_70 = arith.constant 0 : index
    %c0_71 = arith.constant 0 : index
    %164 = vector.load %arg2[%c30, %c0_70, %c0_71] : memref<49x2x256xf32, #tpu.memory_space<vmem>>, vector<1x2x256xf32>
    %165 = vector.shape_cast %164 : vector<1x2x256xf32> to vector<2x256xf32>
    %166 = arith.mulf %163, %165 : vector<2x256xf32>
    %167 = arith.addf %147, %166 : vector<2x256xf32>
    %c240_i32 = arith.constant 240 : i32
    %168 = tpu.dynamic_rotate %9 by %c240_i32 dim 1 : vector<2x256xf32>, i32 -> vector<2x256xf32>
    %c31 = arith.constant 31 : index
    %c0_72 = arith.constant 0 : index
    %c0_73 = arith.constant 0 : index
    %169 = vector.load %arg2[%c31, %c0_72, %c0_73] : memref<49x2x256xf32, #tpu.memory_space<vmem>>, vector<1x2x256xf32>
    %170 = vector.shape_cast %169 : vector<1x2x256xf32> to vector<2x256xf32>
    %171 = arith.mulf %168, %170 : vector<2x256xf32>
    %172 = arith.addf %152, %171 : vector<2x256xf32>
    %c239_i32 = arith.constant 239 : i32
    %173 = tpu.dynamic_rotate %9 by %c239_i32 dim 1 : vector<2x256xf32>, i32 -> vector<2x256xf32>
    %c32 = arith.constant 32 : index
    %c0_74 = arith.constant 0 : index
    %c0_75 = arith.constant 0 : index
    %174 = vector.load %arg2[%c32, %c0_74, %c0_75] : memref<49x2x256xf32, #tpu.memory_space<vmem>>, vector<1x2x256xf32>
    %175 = vector.shape_cast %174 : vector<1x2x256xf32> to vector<2x256xf32>
    %176 = arith.mulf %173, %175 : vector<2x256xf32>
    %177 = arith.addf %157, %176 : vector<2x256xf32>
    %c238_i32 = arith.constant 238 : i32
    %178 = tpu.dynamic_rotate %9 by %c238_i32 dim 1 : vector<2x256xf32>, i32 -> vector<2x256xf32>
    %c33 = arith.constant 33 : index
    %c0_76 = arith.constant 0 : index
    %c0_77 = arith.constant 0 : index
    %179 = vector.load %arg2[%c33, %c0_76, %c0_77] : memref<49x2x256xf32, #tpu.memory_space<vmem>>, vector<1x2x256xf32>
    %180 = vector.shape_cast %179 : vector<1x2x256xf32> to vector<2x256xf32>
    %181 = arith.mulf %178, %180 : vector<2x256xf32>
    %182 = arith.addf %162, %181 : vector<2x256xf32>
    %c237_i32 = arith.constant 237 : i32
    %183 = tpu.dynamic_rotate %9 by %c237_i32 dim 1 : vector<2x256xf32>, i32 -> vector<2x256xf32>
    %c34 = arith.constant 34 : index
    %c0_78 = arith.constant 0 : index
    %c0_79 = arith.constant 0 : index
    %184 = vector.load %arg2[%c34, %c0_78, %c0_79] : memref<49x2x256xf32, #tpu.memory_space<vmem>>, vector<1x2x256xf32>
    %185 = vector.shape_cast %184 : vector<1x2x256xf32> to vector<2x256xf32>
    %186 = arith.mulf %183, %185 : vector<2x256xf32>
    %187 = arith.addf %167, %186 : vector<2x256xf32>
    %c227_i32 = arith.constant 227 : i32
    %188 = tpu.dynamic_rotate %9 by %c227_i32 dim 1 : vector<2x256xf32>, i32 -> vector<2x256xf32>
    %c35 = arith.constant 35 : index
    %c0_80 = arith.constant 0 : index
    %c0_81 = arith.constant 0 : index
    %189 = vector.load %arg2[%c35, %c0_80, %c0_81] : memref<49x2x256xf32, #tpu.memory_space<vmem>>, vector<1x2x256xf32>
    %190 = vector.shape_cast %189 : vector<1x2x256xf32> to vector<2x256xf32>
    %191 = arith.mulf %188, %190 : vector<2x256xf32>
    %192 = arith.addf %172, %191 : vector<2x256xf32>
    %c226_i32 = arith.constant 226 : i32
    %193 = tpu.dynamic_rotate %9 by %c226_i32 dim 1 : vector<2x256xf32>, i32 -> vector<2x256xf32>
    %c36 = arith.constant 36 : index
    %c0_82 = arith.constant 0 : index
    %c0_83 = arith.constant 0 : index
    %194 = vector.load %arg2[%c36, %c0_82, %c0_83] : memref<49x2x256xf32, #tpu.memory_space<vmem>>, vector<1x2x256xf32>
    %195 = vector.shape_cast %194 : vector<1x2x256xf32> to vector<2x256xf32>
    %196 = arith.mulf %193, %195 : vector<2x256xf32>
    %197 = arith.addf %177, %196 : vector<2x256xf32>
    %c225_i32 = arith.constant 225 : i32
    %198 = tpu.dynamic_rotate %9 by %c225_i32 dim 1 : vector<2x256xf32>, i32 -> vector<2x256xf32>
    %c37 = arith.constant 37 : index
    %c0_84 = arith.constant 0 : index
    %c0_85 = arith.constant 0 : index
    %199 = vector.load %arg2[%c37, %c0_84, %c0_85] : memref<49x2x256xf32, #tpu.memory_space<vmem>>, vector<1x2x256xf32>
    %200 = vector.shape_cast %199 : vector<1x2x256xf32> to vector<2x256xf32>
    %201 = arith.mulf %198, %200 : vector<2x256xf32>
    %202 = arith.addf %182, %201 : vector<2x256xf32>
    %c224_i32 = arith.constant 224 : i32
    %203 = tpu.dynamic_rotate %9 by %c224_i32 dim 1 : vector<2x256xf32>, i32 -> vector<2x256xf32>
    %c38 = arith.constant 38 : index
    %c0_86 = arith.constant 0 : index
    %c0_87 = arith.constant 0 : index
    %204 = vector.load %arg2[%c38, %c0_86, %c0_87] : memref<49x2x256xf32, #tpu.memory_space<vmem>>, vector<1x2x256xf32>
    %205 = vector.shape_cast %204 : vector<1x2x256xf32> to vector<2x256xf32>
    %206 = arith.mulf %203, %205 : vector<2x256xf32>
    %207 = arith.addf %187, %206 : vector<2x256xf32>
    %c223_i32 = arith.constant 223 : i32
    %208 = tpu.dynamic_rotate %9 by %c223_i32 dim 1 : vector<2x256xf32>, i32 -> vector<2x256xf32>
    %c39 = arith.constant 39 : index
    %c0_88 = arith.constant 0 : index
    %c0_89 = arith.constant 0 : index
    %209 = vector.load %arg2[%c39, %c0_88, %c0_89] : memref<49x2x256xf32, #tpu.memory_space<vmem>>, vector<1x2x256xf32>
    %210 = vector.shape_cast %209 : vector<1x2x256xf32> to vector<2x256xf32>
    %211 = arith.mulf %208, %210 : vector<2x256xf32>
    %212 = arith.addf %192, %211 : vector<2x256xf32>
    %c222_i32 = arith.constant 222 : i32
    %213 = tpu.dynamic_rotate %9 by %c222_i32 dim 1 : vector<2x256xf32>, i32 -> vector<2x256xf32>
    %c40 = arith.constant 40 : index
    %c0_90 = arith.constant 0 : index
    %c0_91 = arith.constant 0 : index
    %214 = vector.load %arg2[%c40, %c0_90, %c0_91] : memref<49x2x256xf32, #tpu.memory_space<vmem>>, vector<1x2x256xf32>
    %215 = vector.shape_cast %214 : vector<1x2x256xf32> to vector<2x256xf32>
    %216 = arith.mulf %213, %215 : vector<2x256xf32>
    %217 = arith.addf %197, %216 : vector<2x256xf32>
    %c221_i32 = arith.constant 221 : i32
    %218 = tpu.dynamic_rotate %9 by %c221_i32 dim 1 : vector<2x256xf32>, i32 -> vector<2x256xf32>
    %c41 = arith.constant 41 : index
    %c0_92 = arith.constant 0 : index
    %c0_93 = arith.constant 0 : index
    %219 = vector.load %arg2[%c41, %c0_92, %c0_93] : memref<49x2x256xf32, #tpu.memory_space<vmem>>, vector<1x2x256xf32>
    %220 = vector.shape_cast %219 : vector<1x2x256xf32> to vector<2x256xf32>
    %221 = arith.mulf %218, %220 : vector<2x256xf32>
    %222 = arith.addf %202, %221 : vector<2x256xf32>
    %c211_i32 = arith.constant 211 : i32
    %223 = tpu.dynamic_rotate %9 by %c211_i32 dim 1 : vector<2x256xf32>, i32 -> vector<2x256xf32>
    %c42 = arith.constant 42 : index
    %c0_94 = arith.constant 0 : index
    %c0_95 = arith.constant 0 : index
    %224 = vector.load %arg2[%c42, %c0_94, %c0_95] : memref<49x2x256xf32, #tpu.memory_space<vmem>>, vector<1x2x256xf32>
    %225 = vector.shape_cast %224 : vector<1x2x256xf32> to vector<2x256xf32>
    %226 = arith.mulf %223, %225 : vector<2x256xf32>
    %227 = arith.addf %207, %226 : vector<2x256xf32>
    %c210_i32 = arith.constant 210 : i32
    %228 = tpu.dynamic_rotate %9 by %c210_i32 dim 1 : vector<2x256xf32>, i32 -> vector<2x256xf32>
    %c43 = arith.constant 43 : index
    %c0_96 = arith.constant 0 : index
    %c0_97 = arith.constant 0 : index
    %229 = vector.load %arg2[%c43, %c0_96, %c0_97] : memref<49x2x256xf32, #tpu.memory_space<vmem>>, vector<1x2x256xf32>
    %230 = vector.shape_cast %229 : vector<1x2x256xf32> to vector<2x256xf32>
    %231 = arith.mulf %228, %230 : vector<2x256xf32>
    %232 = arith.addf %212, %231 : vector<2x256xf32>
    %c209_i32 = arith.constant 209 : i32
    %233 = tpu.dynamic_rotate %9 by %c209_i32 dim 1 : vector<2x256xf32>, i32 -> vector<2x256xf32>
    %c44 = arith.constant 44 : index
    %c0_98 = arith.constant 0 : index
    %c0_99 = arith.constant 0 : index
    %234 = vector.load %arg2[%c44, %c0_98, %c0_99] : memref<49x2x256xf32, #tpu.memory_space<vmem>>, vector<1x2x256xf32>
    %235 = vector.shape_cast %234 : vector<1x2x256xf32> to vector<2x256xf32>
    %236 = arith.mulf %233, %235 : vector<2x256xf32>
    %237 = arith.addf %217, %236 : vector<2x256xf32>
    %c208_i32 = arith.constant 208 : i32
    %238 = tpu.dynamic_rotate %9 by %c208_i32 dim 1 : vector<2x256xf32>, i32 -> vector<2x256xf32>
    %c45 = arith.constant 45 : index
    %c0_100 = arith.constant 0 : index
    %c0_101 = arith.constant 0 : index
    %239 = vector.load %arg2[%c45, %c0_100, %c0_101] : memref<49x2x256xf32, #tpu.memory_space<vmem>>, vector<1x2x256xf32>
    %240 = vector.shape_cast %239 : vector<1x2x256xf32> to vector<2x256xf32>
    %241 = arith.mulf %238, %240 : vector<2x256xf32>
    %242 = arith.addf %222, %241 : vector<2x256xf32>
    %c207_i32 = arith.constant 207 : i32
    %243 = tpu.dynamic_rotate %9 by %c207_i32 dim 1 : vector<2x256xf32>, i32 -> vector<2x256xf32>
    %c46 = arith.constant 46 : index
    %c0_102 = arith.constant 0 : index
    %c0_103 = arith.constant 0 : index
    %244 = vector.load %arg2[%c46, %c0_102, %c0_103] : memref<49x2x256xf32, #tpu.memory_space<vmem>>, vector<1x2x256xf32>
    %245 = vector.shape_cast %244 : vector<1x2x256xf32> to vector<2x256xf32>
    %246 = arith.mulf %243, %245 : vector<2x256xf32>
    %247 = arith.addf %227, %246 : vector<2x256xf32>
    %c206_i32 = arith.constant 206 : i32
    %248 = tpu.dynamic_rotate %9 by %c206_i32 dim 1 : vector<2x256xf32>, i32 -> vector<2x256xf32>
    %c47 = arith.constant 47 : index
    %c0_104 = arith.constant 0 : index
    %c0_105 = arith.constant 0 : index
    %249 = vector.load %arg2[%c47, %c0_104, %c0_105] : memref<49x2x256xf32, #tpu.memory_space<vmem>>, vector<1x2x256xf32>
    %250 = vector.shape_cast %249 : vector<1x2x256xf32> to vector<2x256xf32>
    %251 = arith.mulf %248, %250 : vector<2x256xf32>
    %252 = arith.addf %232, %251 : vector<2x256xf32>
    %c205_i32 = arith.constant 205 : i32
    %253 = tpu.dynamic_rotate %9 by %c205_i32 dim 1 : vector<2x256xf32>, i32 -> vector<2x256xf32>
    %c48 = arith.constant 48 : index
    %c0_106 = arith.constant 0 : index
    %c0_107 = arith.constant 0 : index
    %254 = vector.load %arg2[%c48, %c0_106, %c0_107] : memref<49x2x256xf32, #tpu.memory_space<vmem>>, vector<1x2x256xf32>
    %255 = vector.shape_cast %254 : vector<1x2x256xf32> to vector<2x256xf32>
    %256 = arith.mulf %253, %255 : vector<2x256xf32>
    %257 = arith.addf %237, %256 : vector<2x256xf32>
    %258 = arith.addf %257, %242 : vector<2x256xf32>
    %259 = arith.addf %247, %252 : vector<2x256xf32>
    %260 = arith.addf %258, %259 : vector<2x256xf32>
    %cst_108 = arith.constant dense<0.000000e+00> : vector<256xf32>
    %261 = vector.multi_reduction <add>, %260, %cst_108 [0] : vector<2x256xf32> to vector<256xf32>
    %262 = vector.shape_cast %261 : vector<256xf32> to vector<1x256xf32>
    %263 = vector.broadcast %0 : f32 to vector<1x256xf32>
    %264 = arith.addf %262, %263 : vector<1x256xf32>
    %cst_109 = arith.constant 0.000000e+00 : f32
    %265 = vector.broadcast %cst_109 : f32 to vector<1x256xf32>
    %266 = arith.subf %265, %264 : vector<1x256xf32>
    %267 = math.exp %266 : vector<1x256xf32>
    %cst_110 = arith.constant 1.000000e+00 : f32
    %268 = vector.broadcast %cst_110 : f32 to vector<1x256xf32>
    %269 = arith.addf %268, %267 : vector<1x256xf32>
    %cst_111 = arith.constant 1.000000e+00 : f32
    %270 = vector.broadcast %cst_111 : f32 to vector<1x256xf32>
    %271 = arith.divf %270, %269 : vector<1x256xf32>
    %272 = vector.broadcast %271 : vector<1x256xf32> to vector<4x256xf32>
    %273 = arith.mulf %2, %272 : vector<4x256xf32>
    %c0_112 = arith.constant 0 : index
    %c0_113 = arith.constant 0 : index
    %c0_114 = arith.constant 0 : index
    %274 = vector.load %arg4[%c0_112, %c0_113, %c0_114] : memref<1x4x256xf32, #tpu.memory_space<vmem>>, vector<1x4x256xf32>
    %275 = vector.shape_cast %274 : vector<1x4x256xf32> to vector<4x256xf32>
    %276 = vector.shape_cast %273 : vector<4x256xf32> to vector<1x4x256xf32>
    tpu.vector_store %arg4[%c0_112, %c0_113, %c0_114], %276 {strides = array<i32>} : memref<1x4x256xf32, #tpu.memory_space<vmem>>, vector<1x4x256xf32>,
    return
  }
  func.func @transform_0(%arg0: i32) -> i32 {
    %c0_i32 = arith.constant 0 : i32
    %c0_i32_0 = arith.constant 0 : i32
    return %c0_i32 : i32
  }
  func.func @transform_1(%arg0: i32) -> (i32, i32, i32) {
    %c0_i32 = arith.constant 0 : i32
    %c0_i32_0 = arith.constant 0 : i32
    %c0_i32_1 = arith.constant 0 : i32
    %c0_i32_2 = arith.constant 0 : i32
    return %c0_i32, %c0_i32_0, %c0_i32_1 : i32, i32, i32
  }
  func.func @transform_2(%arg0: i32) -> (i32, i32, i32) {
    %c0_i32 = arith.constant 0 : i32
    %c0_i32_0 = arith.constant 0 : i32
    %c0_i32_1 = arith.constant 0 : i32
    return %arg0, %c0_i32, %c0_i32_0 : i32, i32, i32
  }
  func.func @transform_3(%arg0: i32) -> (i32, i32, i32) {
    %c0_i32 = arith.constant 0 : i32
    %c0_i32_0 = arith.constant 0 : i32
    %c0_i32_1 = arith.constant 0 : i32
    return %arg0, %c0_i32, %c0_i32_0 : i32, i32, i32
  }
}

</mosaic_0001>

<llo_original>
// kernel: tpu_custom_call.1
$region0: #{tpu_custom_call.1}
  #allocation0 [shape = 'u32[]', space=smem, size = 0x4, offset = 0x4, fixed_abs, tag = 'smem constant byte address 0x4 - core index']
  #allocation1 [shape = 'u32[144,128]{1,0:T(1,128)}', space=vmem, size = 0x12000, scoped, tag = 'internal scratch']
  #allocation2 [shape = 'f32[1]{0:T(128)S(6)}', space=smem, size = 0x200, scoped, tag = 'scoped memory for tpu_custom_call.1']
  %s0 = inlined_call_operand.<no memory space> [shape: f32[1], index: 0, kind: input, shape index: {}]
  %s1 = inlined_call_operand.hbm [shape: f32[49,2,256], index: 1, kind: input, shape index: {}]
  %s2 = inlined_call_operand.hbm [shape: f32[2,4,256], index: 2, kind: input, shape index: {}]
  %s3 = inlined_call_operand.hbm [shape: f32[2,4,256], index: 3, kind: output, shape index: {}]
  %s4 = sld [smem:[#allocation0]]
  $region53: #{tpu_custom_call.1} parent=0
    _
  %s6 = ssub.s32 1, %s4
  %s7 = scalar_select 0, %s6, %s4
  %8 = sst [smem:[#allocation2]] %s0
  $region1: #{tpu_custom_call.1} parent=0
    #allocation3 [shape = 'u8[100352]{0}', space=vmem, size = 0x18800, scoped, tag = 'input window, operand 1, single buffered']
    #allocation4 [shape = 's32[2]{0}', space=sflag, size = 0x8, scoped, tag = 'scoped memory for tpu_custom_call.1']
    #allocation5 [shape = 's32[2]{0}', space=sflag, size = 0x8, scoped, tag = 'scoped memory for tpu_custom_call.1']
    #allocation6 [shape = 'u8[8192]{0}', space=vmem, size = 0x2000, scoped, tag = 'input window, operand 2']
    #allocation7 [shape = 's32[2]{0}', space=sflag, size = 0x8, scoped, tag = 'scoped memory for tpu_custom_call.1']
    #allocation8 [shape = 'u8[8192]{0}', space=vmem, size = 0x2000, scoped, tag = 'output window, operand 0']
    %9 = vsyncpa [#allocation4], 0
    %10 = vsyncpa [#allocation7], 0
    %s11 = scalar_lea.sflag [#allocation7], 1
    %12 = vsyncpa %s11, 0
    %13 = vsyncpa [#allocation5], 0
    %s14 = scalar_lea.sflag [#allocation5], 1
    %15 = vsyncpa %s14, 0
    loop: start=0, step=1, limit=4
    $region2: #{tpu_custom_call.1} parent=1 // loop_pre_header
      _
    $region3: #{tpu_custom_call.1} parent=1 // loop_header
      %s17 = sphi 0, %s21
      %p18 = scmp.ge.s32.totalorder %s17, 4
      %s25 = sphi 0, %s25
      %s27 = sphi 0, %s25
      %s28 = sphi 0, %s27
      %s42 = sphi 0, %s28
      %s46 = sphi 0, %s46
      %s48 = sphi 0, %s46
      %s49 = sphi 0, %s48
      %s63 = sphi 0, %s49
      %s69 = sphi 0, %s71
      %s72 = sphi 0, %s69
      %s73 = sphi 0, %s72
      %s89 = sphi 0, %s73
      %s95 = sphi 0, %s97
      %s98 = sphi 0, %s95
      %s99 = sphi 0, %s98
      %s115 = sphi 0, %s99
    $region4: #{tpu_custom_call.1} parent=1 // loop_header_branch
      %20 = sbr.rel (%p18) target = $region8
    $region5: #{tpu_custom_call.1} parent=1 // loop_body
      %s22 = ssub.s32 %s17, 1
      %s23 = ssub.s32 %s17, 2
      %s24 = sadd.s32 %s17, 1
      %s26 = sadd.s32 %s25, 1
      %p29 = scmp.eq.s32.totalorder %s17, 1
      %p30 = scmp.ne.s32.totalorder %s25, %s27
      %p31 = scmp.eq.s32.totalorder %s17, 0
      %p32 = por %p30, %p31
      %p33 = scmp.ne.s32.totalorder %s25, %s27
      %p34 = scmp.eq.s32.totalorder %s22, 1
      %p35 = por %p33, %p34
      %p36 = scmp.ne.s32.totalorder %s27, %s28
      %p37 = scmp.eq.s32.totalorder %s22, 0
      %p38 = por %p36, %p37
      %p39 = scmp.ne.s32.totalorder %s27, %s28
      %p40 = scmp.eq.s32.totalorder %s23, 1
      %p41 = por %p39, %p40
      %p43 = scmp.ne.s32.totalorder %s28, %s42
      %p44 = scmp.eq.s32.totalorder %s23, 0
      %p45 = por %p43, %p44
      %s47 = sadd.s32 %s46, 1
      %p50 = scmp.eq.s32.totalorder %s17, 1
      %p51 = scmp.ne.s32.totalorder %s46, %s48
      %p52 = scmp.eq.s32.totalorder %s17, 0
      %p53 = por %p51, %p52
      %p54 = scmp.ne.s32.totalorder %s46, %s48
      %p55 = scmp.eq.s32.totalorder %s22, 1
      %p56 = por %p54, %p55
      %p57 = scmp.ne.s32.totalorder %s48, %s49
      %p58 = scmp.eq.s32.totalorder %s22, 0
      %p59 = por %p57, %p58
      %p60 = scmp.ne.s32.totalorder %s48, %s49
      %p61 = scmp.eq.s32.totalorder %s23, 1
      %p62 = por %p60, %p61
      %p64 = scmp.ne.s32.totalorder %s49, %s63
      %p65 = scmp.eq.s32.totalorder %s23, 0
      %p66 = por %p64, %p65
      %s67 = ssub.s32 %s17, %s24
      %p68 = scmp.eq.s32.totalorder %s67, 0
      %s70 = sadd.s32 %s69, 1
      %s71 = scalar_select %p68, %s69, %s70
      %p74 = pneg %p68
      %p75 = scmp.eq.s32.totalorder %s17, 1
      %p76 = por %p74, %p75
      %p77 = scmp.ne.s32.totalorder %s69, %s72
      %p78 = scmp.eq.s32.totalorder %s17, 0
      %p79 = por %p77, %p78
      %p80 = scmp.ne.s32.totalorder %s69, %s72
      %p81 = scmp.eq.s32.totalorder %s22, 1
      %p82 = por %p80, %p81
      %p83 = scmp.ne.s32.totalorder %s72, %s73
      %p84 = scmp.eq.s32.totalorder %s22, 0
      %p85 = por %p83, %p84
      %p86 = scmp.ne.s32.totalorder %s72, %s73
      %p87 = scmp.eq.s32.totalorder %s23, 1
      %p88 = por %p86, %p87
      %p90 = scmp.ne.s32.totalorder %s73, %s89
      %p91 = scmp.eq.s32.totalorder %s23, 0
      %p92 = por %p90, %p91
      %s93 = ssub.s32 %s17, %s24
      %p94 = scmp.eq.s32.totalorder %s93, 0
      %s96 = sadd.s32 %s95, 1
      %s97 = scalar_select %p94, %s95, %s96
      %p100 = pneg %p94
      %p101 = scmp.eq.s32.totalorder %s17, 1
      %p102 = por %p100, %p101
      %p103 = scmp.ne.s32.totalorder %s95, %s98
      %p104 = scmp.eq.s32.totalorder %s17, 0
      %p105 = por %p103, %p104
      %p106 = scmp.ne.s32.totalorder %s95, %s98
      %p107 = scmp.eq.s32.totalorder %s22, 1
      %p108 = por %p106, %p107
      %p109 = scmp.ne.s32.totalorder %s98, %s99
      %p110 = scmp.eq.s32.totalorder %s22, 0
      %p111 = por %p109, %p110
      %p112 = scmp.ne.s32.totalorder %s98, %s99
      %p113 = scmp.eq.s32.totalorder %s23, 1
      %p114 = por %p112, %p113
      %p116 = scmp.ne.s32.totalorder %s99, %s115
      %p117 = scmp.eq.s32.totalorder %s23, 0
      %p118 = por %p116, %p117
      %p119 = scmp.le.s32.totalorder 1, %s17
      %p120 = scmp.lt.s32.totalorder %s17, 3
      %p121 = pnand %p119, %p120
      %p122 = pneg %p121
      // Predicated region
      $region9: #{tpu_custom_call.1} parent=5 // pred_check
        _
      $region10: #{tpu_custom_call.1} parent=5 // pred_check_branch
        %124 = sbr.rel (%p121) target = $region12
      $region11: #{tpu_custom_call.1} parent=5 // pred_region
        %s125 = ssub.s32 %s17, 1
        // Predicated region
        $region13: #{tpu_custom_call.1} parent=11 // pred_check
          %p126 = pneg %p38
        $region14: #{tpu_custom_call.1} parent=11 // pred_check_branch
          %128 = sbr.rel (%p126) target = $region16
        $region15: #{tpu_custom_call.1} parent=11 // pred_region
          _
        $region16: #{tpu_custom_call.1} parent=11 // pred_fallthru
          _
        // Predicated region
        $region17: #{tpu_custom_call.1} parent=11 // pred_check
          %p129 = pneg %p59
        $region18: #{tpu_custom_call.1} parent=11 // pred_check_branch
          %131 = sbr.rel (%p129) target = $region20
        $region19: #{tpu_custom_call.1} parent=11 // pred_region
          %s133 = ssub.s32 3136, 3136
          %134 = vsyncadd [#allocation4], %s133
          %s135 = sshll.u32 [#allocation3], 4
          %s136 = int_to_ptr.vmem [resolvable:$true] %s135
          %141 = dma.hbm_to_vmem [thread:$0]  %s1, 3136, %s136, [#allocation4], 64, 64, 4
        $region20: #{tpu_custom_call.1} parent=11 // pred_fallthru
          _
      $region12: #{tpu_custom_call.1} parent=5 // pred_fallthru
        _
      %p142 = scmp.lt.s32.totalorder %s17, 2
      // Predicated region
      $region21: #{tpu_custom_call.1} parent=5 // pred_check
        %p143 = pneg %p142
      $region22: #{tpu_custom_call.1} parent=5 // pred_check_branch
        %145 = sbr.rel (%p143) target = $region24
      $region23: #{tpu_custom_call.1} parent=5 // pred_region
        // Predicated region
        $region25: #{tpu_custom_call.1} parent=23 // pred_check
          %p146 = pneg %p79
        $region26: #{tpu_custom_call.1} parent=23 // pred_check_branch
          %148 = sbr.rel (%p146) target = $region28
        $region27: #{tpu_custom_call.1} parent=23 // pred_region
          %s149 = sand.u32 %s69, 1
          %s150 = scalar_lea.sflag [#allocation7], %s149
          %s151 = sand.u32 %s69, 1
          %s152 = smul.addr %s151, 8
          %s153 = scalar_lea.vmem [#allocation6], %s152
          %s155 = ssub.s32 128, 128
          %156 = vsyncadd %s150, %s155
          %s157 = smul.addr %s17, 2
          %s158 = smul.addr %s157, 64
          %s159 = scalar_lea.hbm %s2, %s158
          %s161 = sshll.u32 %s153, 4
          %s162 = int_to_ptr.vmem [resolvable:$true] %s161
          %164 = dma.hbm_to_vmem [thread:$0]  %s159, 128, %s162, %s150
        $region28: #{tpu_custom_call.1} parent=23 // pred_fallthru
          _
      $region24: #{tpu_custom_call.1} parent=5 // pred_fallthru
        _
      %p165 = scmp.le.s32.totalorder 1, %s17
      %p166 = scmp.lt.s32.totalorder %s17, 3
      %p167 = pnand %p165, %p166
      %p168 = pneg %p167
      // Predicated region
      $region29: #{tpu_custom_call.1} parent=5 // pred_check
        _
      $region30: #{tpu_custom_call.1} parent=5 // pred_check_branch
        %170 = sbr.rel (%p167) target = $region32
      $region31: #{tpu_custom_call.1} parent=5 // pred_region
        %s171 = ssub.s32 %s17, 1
        // Predicated region
        $region33: #{tpu_custom_call.1} parent=31 // pred_check
          %p172 = pneg %p59
        $region34: #{tpu_custom_call.1} parent=31 // pred_check_branch
          %174 = sbr.rel (%p172) target = $region36
        $region35: #{tpu_custom_call.1} parent=31 // pred_region
          %175 = dma.done [#allocation4], 3136
        $region36: #{tpu_custom_call.1} parent=31 // pred_fallthru
          _
        %s176 = sand.u32 %s72, 1
        %s177 = scalar_lea.sflag [#allocation7], %s176
        %s178 = sand.u32 %s72, 1
        %s179 = smul.addr %s178, 8
        %s180 = scalar_lea.vmem [#allocation6], %s179
        // Predicated region
        $region37: #{tpu_custom_call.1} parent=31 // pred_check
          %p181 = pneg %p85
        $region38: #{tpu_custom_call.1} parent=31 // pred_check_branch
          %183 = sbr.rel (%p181) target = $region40
        $region39: #{tpu_custom_call.1} parent=31 // pred_region
          %184 = dma.done %s177, 128
        $region40: #{tpu_custom_call.1} parent=31 // pred_fallthru
          _
        %p185 = pneg %p38
        %p186 = pneg %p35
        %p187 = pneg %p59
        %p188 = pneg %p56
        %s189 = sand.u32 %s72, 1
        %s190 = scalar_lea.sflag [#allocation7], %s189
        %s191 = sand.u32 %s72, 1
        %s192 = smul.addr %s191, 8
        %s193 = scalar_lea.vmem [#allocation6], %s192
        %p194 = pneg %p85
        %p195 = pneg %p82
        %p196 = pneg %p111
        %p197 = pneg %p108
        %s198 = sand.u32 %s98, 1
        %s199 = scalar_lea.sflag [#allocation5], %s198
        %s200 = sand.u32 %s98, 1
        %s201 = smul.addr %s200, 8
        %s202 = scalar_lea.vmem [#allocation8], %s201
        %s203 = sld [smem:[#allocation2]]
        %v204 = vld [vmem:[%s180] sm:$0xff]
        %v206 = vcombine.high %v204, %v204
        %vm208 = vcmask 1043456
        %v209 = vsel %vm208, %v204, -inf
        %v210 = vrot.slane %v209, 4
        %v211 = vmax.f32 %v209, %v210
        %v212 = vrot.slane %v211, 2
        %v213 = vmax.f32 %v211, %v212
        %v214 = vrot.slane %v213, 1
        %v215 = vmax.f32 %v213, %v214
        %v216 = vsel %vm208, %v206, -inf
        %v217 = vrot.slane %v216, 4
        %v218 = vmax.f32 %v216, %v217
        %v219 = vrot.slane %v218, 2
        %v220 = vmax.f32 %v218, %v219
        %v221 = vrot.slane %v220, 1
        %v222 = vmax.f32 %v220, %v221
        %v223 = vsel %vm208, %v204, 0.0
        %v224 = vrot.slane %v223, 4
        %v225 = vadd.f32 %v223, %v224
        %v226 = vrot.slane %v225, 2
        %v227 = vadd.f32 %v225, %v226
        %v228 = vrot.slane %v227, 1
        %v229 = vadd.f32 %v227, %v228
        %v230 = vsel %vm208, %v206, 0.0
        %v231 = vrot.slane %v230, 4
        %v232 = vadd.f32 %v230, %v231
        %v233 = vrot.slane %v232, 2
        %v234 = vadd.f32 %v232, %v233
        %v235 = vrot.slane %v234, 1
        %v236 = vadd.f32 %v234, %v235
        %v237 = vmul.f32 %v229, 0.25
        %v238 = vmul.f32 %v236, 0.25
        %vm239 = vcmask 1040384
        %v240 = vsel %vm239, %v215, %v237
        %v241 = vsel %vm239, %v222, %v238
        %242 = vrot.lane.b32.xlu0 %v240, 51
        %v243 = vpop.permute.xlu0 %242
        %244 = vrot.lane.b32.xlu0 %v241, 51
        %v245 = vpop.permute.xlu0 %244
        %v246 = vlaneseq
        %v247 = vand.u32 %v246, 127
        %vm248 = vcmp.lt.s32.totalorder %v247, 51
        %v249 = vsel %vm248, %v243, %v245
        %v250 = vsel %vm248, %v245, %v243
        %v251 = vld [vmem:[#allocation3] sm:$0xf]
        %v254 = vunpack.c.l.s4 1983009808
        %v255 = vunpack.c.0.s8 %v254
        %v256 = vlaneseq
        %v257 = vshrl.u32 %v256, 7
        %v258 = vsub.s32 %v255, %v257
        %v259 = vrot.slane %v251, %v258
        %v260 = vcombine.high %v259, %v259
        %v263 = vmul.f32 %v250, %v259
        %v264 = vmul.f32 %v249, %v260
        %v265 = vadd.f32 %v263, 0.0
        %v266 = vadd.f32 %v264, 0.0
        %267 = vrot.lane.b32.xlu0 %v240, 50
        %v268 = vpop.permute.xlu0 %267
        %269 = vrot.lane.b32.xlu0 %v241, 50
        %v270 = vpop.permute.xlu0 %269
        %vm271 = vcmp.lt.s32.totalorder %v247, 50
        %v272 = vsel %vm271, %v268, %v270
        %v273 = vsel %vm271, %v270, %v268
        %s274 = scalar_lea.vmem [#allocation3], 4
        %v275 = vld [vmem:[%s274] sm:$0xf]
        %v278 = vunpack.c.l.s4 1983009808
        %v279 = vunpack.c.0.s8 %v278
        %v280 = vlaneseq
        %v281 = vshrl.u32 %v280, 7
        %v282 = vsub.s32 %v279, %v281
        %v283 = vrot.slane %v275, %v282
        %v284 = vcombine.high %v283, %v283
        %v287 = vmul.f32 %v273, %v283
        %v288 = vmul.f32 %v272, %v284
        %v289 = vadd.f32 %v287, 0.0
        %v290 = vadd.f32 %v288, 0.0
        %291 = vrot.lane.b32.xlu0 %v240, 49
        %v292 = vpop.permute.xlu0 %291
        %293 = vrot.lane.b32.xlu0 %v241, 49
        %v294 = vpop.permute.xlu0 %293
        %vm295 = vcmp.lt.s32.totalorder %v247, 49
        %v296 = vsel %vm295, %v292, %v294
        %v297 = vsel %vm295, %v294, %v292
        %s298 = scalar_lea.vmem [#allocation3], 8
        %v299 = vld [vmem:[%s298] sm:$0xf]
        %v302 = vunpack.c.l.s4 1983009808
        %v303 = vunpack.c.0.s8 %v302
        %v304 = vlaneseq
        %v305 = vshrl.u32 %v304, 7
        %v306 = vsub.s32 %v303, %v305
        %v307 = vrot.slane %v299, %v306
        %v308 = vcombine.high %v307, %v307
        %v311 = vmul.f32 %v297, %v307
        %v312 = vmul.f32 %v296, %v308
        %v313 = vadd.f32 %v311, 0.0
        %v314 = vadd.f32 %v312, 0.0
        %315 = vrot.lane.b32.xlu0 %v240, 48
        %v316 = vpop.permute.xlu0 %315
        %317 = vrot.lane.b32.xlu0 %v241, 48
        %v318 = vpop.permute.xlu0 %317
        %vm319 = vcmp.lt.s32.totalorder %v247, 48
        %v320 = vsel %vm319, %v316, %v318
        %v321 = vsel %vm319, %v318, %v316
        %s322 = scalar_lea.vmem [#allocation3], 12
        %v323 = vld [vmem:[%s322] sm:$0xf]
        %v326 = vunpack.c.l.s4 1983009808
        %v327 = vunpack.c.0.s8 %v326
        %v328 = vlaneseq
        %v329 = vshrl.u32 %v328, 7
        %v330 = vsub.s32 %v327, %v329
        %v331 = vrot.slane %v323, %v330
        %v332 = vcombine.high %v331, %v331
        %v335 = vmul.f32 %v321, %v331
        %v336 = vmul.f32 %v320, %v332
        %v337 = vadd.f32 %v335, 0.0
        %v338 = vadd.f32 %v336, 0.0
        %339 = vrot.lane.b32.xlu0 %v240, 47
        %v340 = vpop.permute.xlu0 %339
        %341 = vrot.lane.b32.xlu0 %v241, 47
        %v342 = vpop.permute.xlu0 %341
        %vm343 = vcmp.lt.s32.totalorder %v247, 47
        %v344 = vsel %vm343, %v340, %v342
        %v345 = vsel %vm343, %v342, %v340
        %s346 = scalar_lea.vmem [#allocation3], 16
        %v347 = vld [vmem:[%s346] sm:$0xf]
        %v350 = vunpack.c.l.s4 1983009808
        %v351 = vunpack.c.0.s8 %v350
        %v352 = vlaneseq
        %v353 = vshrl.u32 %v352, 7
        %v354 = vsub.s32 %v351, %v353
        %v355 = vrot.slane %v347, %v354
        %v356 = vcombine.high %v355, %v355
        %v359 = vmul.f32 %v345, %v355
        %v360 = vmul.f32 %v344, %v356
        %v361 = vadd.f32 %v265, %v359
        %v362 = vadd.f32 %v266, %v360
        %363 = vrot.lane.b32.xlu0 %v240, 46
        %v364 = vpop.permute.xlu0 %363
        %365 = vrot.lane.b32.xlu0 %v241, 46
        %v366 = vpop.permute.xlu0 %365
        %vm367 = vcmp.lt.s32.totalorder %v247, 46
        %v368 = vsel %vm367, %v364, %v366
        %v369 = vsel %vm367, %v366, %v364
        %s370 = scalar_lea.vmem [#allocation3], 20
        %v371 = vld [vmem:[%s370] sm:$0xf]
        %v374 = vunpack.c.l.s4 1983009808
        %v375 = vunpack.c.0.s8 %v374
        %v376 = vlaneseq
        %v377 = vshrl.u32 %v376, 7
        %v378 = vsub.s32 %v375, %v377
        %v379 = vrot.slane %v371, %v378
        %v380 = vcombine.high %v379, %v379
        %v383 = vmul.f32 %v369, %v379
        %v384 = vmul.f32 %v368, %v380
        %v385 = vadd.f32 %v289, %v383
        %v386 = vadd.f32 %v290, %v384
        %387 = vrot.lane.b32.xlu0 %v240, 45
        %v388 = vpop.permute.xlu0 %387
        %389 = vrot.lane.b32.xlu0 %v241, 45
        %v390 = vpop.permute.xlu0 %389
        %vm391 = vcmp.lt.s32.totalorder %v247, 45
        %v392 = vsel %vm391, %v388, %v390
        %v393 = vsel %vm391, %v390, %v388
        %s394 = scalar_lea.vmem [#allocation3], 24
        %v395 = vld [vmem:[%s394] sm:$0xf]
        %v398 = vunpack.c.l.s4 1983009808
        %v399 = vunpack.c.0.s8 %v398
        %v400 = vlaneseq
        %v401 = vshrl.u32 %v400, 7
        %v402 = vsub.s32 %v399, %v401
        %v403 = vrot.slane %v395, %v402
        %v404 = vcombine.high %v403, %v403
        %v407 = vmul.f32 %v393, %v403
        %v408 = vmul.f32 %v392, %v404
        %v409 = vadd.f32 %v313, %v407
        %v410 = vadd.f32 %v314, %v408
        %411 = vrot.lane.b32.xlu0 %v240, 35
        %v412 = vpop.permute.xlu0 %411
        %413 = vrot.lane.b32.xlu0 %v241, 35
        %v414 = vpop.permute.xlu0 %413
        %vm415 = vcmp.lt.s32.totalorder %v247, 35
        %v416 = vsel %vm415, %v412, %v414
        %v417 = vsel %vm415, %v414, %v412
        %s418 = scalar_lea.vmem [#allocation3], 28
        %v419 = vld [vmem:[%s418] sm:$0xf]
        %v422 = vunpack.c.l.s4 1983009808
        %v423 = vunpack.c.0.s8 %v422
        %v424 = vlaneseq
        %v425 = vshrl.u32 %v424, 7
        %v426 = vsub.s32 %v423, %v425
        %v427 = vrot.slane %v419, %v426
        %v428 = vcombine.high %v427, %v427
        %v431 = vmul.f32 %v417, %v427
        %v432 = vmul.f32 %v416, %v428
        %v433 = vadd.f32 %v337, %v431
        %v434 = vadd.f32 %v338, %v432
        %435 = vrot.lane.b32.xlu0 %v240, 34
        %v436 = vpop.permute.xlu0 %435
        %437 = vrot.lane.b32.xlu0 %v241, 34
        %v438 = vpop.permute.xlu0 %437
        %vm439 = vcmp.lt.s32.totalorder %v247, 34
        %v440 = vsel %vm439, %v436, %v438
        %v441 = vsel %vm439, %v438, %v436
        %s442 = scalar_lea.vmem [#allocation3], 32
        %v443 = vld [vmem:[%s442] sm:$0xf]
        %v446 = vunpack.c.l.s4 1983009808
        %v447 = vunpack.c.0.s8 %v446
        %v448 = vlaneseq
        %v449 = vshrl.u32 %v448, 7
        %v450 = vsub.s32 %v447, %v449
        %v451 = vrot.slane %v443, %v450
        %v452 = vcombine.high %v451, %v451
        %v455 = vmul.f32 %v441, %v451
        %v456 = vmul.f32 %v440, %v452
        %v457 = vadd.f32 %v361, %v455
        %v458 = vadd.f32 %v362, %v456
        %459 = vrot.lane.b32.xlu0 %v240, 33
        %v460 = vpop.permute.xlu0 %459
        %461 = vrot.lane.b32.xlu0 %v241, 33
        %v462 = vpop.permute.xlu0 %461
        %vm463 = vcmp.lt.s32.totalorder %v247, 33
        %v464 = vsel %vm463, %v460, %v462
        %v465 = vsel %vm463, %v462, %v460
        %s466 = scalar_lea.vmem [#allocation3], 36
        %v467 = vld [vmem:[%s466] sm:$0xf]
        %v470 = vunpack.c.l.s4 1983009808
        %v471 = vunpack.c.0.s8 %v470
        %v472 = vlaneseq
        %v473 = vshrl.u32 %v472, 7
        %v474 = vsub.s32 %v471, %v473
        %v475 = vrot.slane %v467, %v474
        %v476 = vcombine.high %v475, %v475
        %v479 = vmul.f32 %v465, %v475
        %v480 = vmul.f32 %v464, %v476
        %v481 = vadd.f32 %v385, %v479
        %v482 = vadd.f32 %v386, %v480
        %483 = vrot.lane.b32.xlu0 %v240, 32
        %v484 = vpop.permute.xlu0 %483
        %485 = vrot.lane.b32.xlu0 %v241, 32
        %v486 = vpop.permute.xlu0 %485
        %vm487 = vcmp.lt.s32.totalorder %v247, 32
        %v488 = vsel %vm487, %v484, %v486
        %v489 = vsel %vm487, %v486, %v484
        %s490 = scalar_lea.vmem [#allocation3], 40
        %v491 = vld [vmem:[%s490] sm:$0xf]
        %v494 = vunpack.c.l.s4 1983009808
        %v495 = vunpack.c.0.s8 %v494
        %v496 = vlaneseq
        %v497 = vshrl.u32 %v496, 7
        %v498 = vsub.s32 %v495, %v497
        %v499 = vrot.slane %v491, %v498
        %v500 = vcombine.high %v499, %v499
        %v503 = vmul.f32 %v489, %v499
        %v504 = vmul.f32 %v488, %v500
        %v505 = vadd.f32 %v409, %v503
        %v506 = vadd.f32 %v410, %v504
        %507 = vrot.lane.b32.xlu0 %v240, 31
        %v508 = vpop.permute.xlu0 %507
        %509 = vrot.lane.b32.xlu0 %v241, 31
        %v510 = vpop.permute.xlu0 %509
        %vm511 = vcmp.lt.s32.totalorder %v247, 31
        %v512 = vsel %vm511, %v508, %v510
        %v513 = vsel %vm511, %v510, %v508
        %s514 = scalar_lea.vmem [#allocation3], 44
        %v515 = vld [vmem:[%s514] sm:$0xf]
        %v518 = vunpack.c.l.s4 1983009808
        %v519 = vunpack.c.0.s8 %v518
        %v520 = vlaneseq
        %v521 = vshrl.u32 %v520, 7
        %v522 = vsub.s32 %v519, %v521
        %v523 = vrot.slane %v515, %v522
        %v524 = vcombine.high %v523, %v523
        %v527 = vmul.f32 %v513, %v523
        %v528 = vmul.f32 %v512, %v524
        %v529 = vadd.f32 %v433, %v527
        %v530 = vadd.f32 %v434, %v528
        %531 = vrot.lane.b32.xlu0 %v240, 30
        %v532 = vpop.permute.xlu0 %531
        %533 = vrot.lane.b32.xlu0 %v241, 30
        %v534 = vpop.permute.xlu0 %533
        %vm535 = vcmp.lt.s32.totalorder %v247, 30
        %v536 = vsel %vm535, %v532, %v534
        %v537 = vsel %vm535, %v534, %v532
        %s538 = scalar_lea.vmem [#allocation3], 48
        %v539 = vld [vmem:[%s538] sm:$0xf]
        %v542 = vunpack.c.l.s4 1983009808
        %v543 = vunpack.c.0.s8 %v542
        %v544 = vlaneseq
        %v545 = vshrl.u32 %v544, 7
        %v546 = vsub.s32 %v543, %v545
        %v547 = vrot.slane %v539, %v546
        %v548 = vcombine.high %v547, %v547
        %v551 = vmul.f32 %v537, %v547
        %v552 = vmul.f32 %v536, %v548
        %v553 = vadd.f32 %v457, %v551
        %v554 = vadd.f32 %v458, %v552
        %555 = vrot.lane.b32.xlu0 %v240, 29
        %v556 = vpop.permute.xlu0 %555
        %557 = vrot.lane.b32.xlu0 %v241, 29
        %v558 = vpop.permute.xlu0 %557
        %vm559 = vcmp.lt.s32.totalorder %v247, 29
        %v560 = vsel %vm559, %v556, %v558
        %v561 = vsel %vm559, %v558, %v556
        %s562 = scalar_lea.vmem [#allocation3], 52
        %v563 = vld [vmem:[%s562] sm:$0xf]
        %v566 = vunpack.c.l.s4 1983009808
        %v567 = vunpack.c.0.s8 %v566
        %v568 = vlaneseq
        %v569 = vshrl.u32 %v568, 7
        %v570 = vsub.s32 %v567, %v569
        %v571 = vrot.slane %v563, %v570
        %v572 = vcombine.high %v571, %v571
        %v575 = vmul.f32 %v561, %v571
        %v576 = vmul.f32 %v560, %v572
        %v577 = vadd.f32 %v481, %v575
        %v578 = vadd.f32 %v482, %v576
        %579 = vrot.lane.b32.xlu0 %v240, 19
        %v580 = vpop.permute.xlu0 %579
        %581 = vrot.lane.b32.xlu0 %v241, 19
        %v582 = vpop.permute.xlu0 %581
        %vm583 = vcmp.lt.s32.totalorder %v247, 19
        %v584 = vsel %vm583, %v580, %v582
        %v585 = vsel %vm583, %v582, %v580
        %s586 = scalar_lea.vmem [#allocation3], 56
        %v587 = vld [vmem:[%s586] sm:$0xf]
        %v590 = vunpack.c.l.s4 1983009808
        %v591 = vunpack.c.0.s8 %v590
        %v592 = vlaneseq
        %v593 = vshrl.u32 %v592, 7
        %v594 = vsub.s32 %v591, %v593
        %v595 = vrot.slane %v587, %v594
        %v596 = vcombine.high %v595, %v595
        %v599 = vmul.f32 %v585, %v595
        %v600 = vmul.f32 %v584, %v596
        %v601 = vadd.f32 %v505, %v599
        %v602 = vadd.f32 %v506, %v600
        %603 = vrot.lane.b32.xlu0 %v240, 18
        %v604 = vpop.permute.xlu0 %603
        %605 = vrot.lane.b32.xlu0 %v241, 18
        %v606 = vpop.permute.xlu0 %605
        %vm607 = vcmp.lt.s32.totalorder %v247, 18
        %v608 = vsel %vm607, %v604, %v606
        %v609 = vsel %vm607, %v606, %v604
        %s610 = scalar_lea.vmem [#allocation3], 60
        %v611 = vld [vmem:[%s610] sm:$0xf]
        %v614 = vunpack.c.l.s4 1983009808
        %v615 = vunpack.c.0.s8 %v614
        %v616 = vlaneseq
        %v617 = vshrl.u32 %v616, 7
        %v618 = vsub.s32 %v615, %v617
        %v619 = vrot.slane %v611, %v618
        %v620 = vcombine.high %v619, %v619
        %v623 = vmul.f32 %v609, %v619
        %v624 = vmul.f32 %v608, %v620
        %v625 = vadd.f32 %v529, %v623
        %v626 = vadd.f32 %v530, %v624
        %627 = vrot.lane.b32.xlu0 %v240, 17
        %v628 = vpop.permute.xlu0 %627
        %629 = vrot.lane.b32.xlu0 %v241, 17
        %v630 = vpop.permute.xlu0 %629
        %vm631 = vcmp.lt.s32.totalorder %v247, 17
        %v632 = vsel %vm631, %v628, %v630
        %v633 = vsel %vm631, %v630, %v628
        %s634 = scalar_lea.vmem [#allocation3], 64
        %v635 = vld [vmem:[%s634] sm:$0xf]
        %v638 = vunpack.c.l.s4 1983009808
        %v639 = vunpack.c.0.s8 %v638
        %v640 = vlaneseq
        %v641 = vshrl.u32 %v640, 7
        %v642 = vsub.s32 %v639, %v641
        %v643 = vrot.slane %v635, %v642
        %v644 = vcombine.high %v643, %v643
        %v647 = vmul.f32 %v633, %v643
        %v648 = vmul.f32 %v632, %v644
        %v649 = vadd.f32 %v553, %v647
        %v650 = vadd.f32 %v554, %v648
        %651 = vrot.lane.b32.xlu0 %v240, 16
        %v652 = vpop.permute.xlu0 %651
        %653 = vrot.lane.b32.xlu0 %v241, 16
        %v654 = vpop.permute.xlu0 %653
        %vm655 = vcmp.lt.s32.totalorder %v247, 16
        %v656 = vsel %vm655, %v652, %v654
        %v657 = vsel %vm655, %v654, %v652
        %s658 = scalar_lea.vmem [#allocation3], 68
        %v659 = vld [vmem:[%s658] sm:$0xf]
        %v662 = vunpack.c.l.s4 1983009808
        %v663 = vunpack.c.0.s8 %v662
        %v664 = vlaneseq
        %v665 = vshrl.u32 %v664, 7
        %v666 = vsub.s32 %v663, %v665
        %v667 = vrot.slane %v659, %v666
        %v668 = vcombine.high %v667, %v667
        %v671 = vmul.f32 %v657, %v667
        %v672 = vmul.f32 %v656, %v668
        %v673 = vadd.f32 %v577, %v671
        %v674 = vadd.f32 %v578, %v672
        %675 = vrot.lane.b32.xlu0 %v240, 15
        %v676 = vpop.permute.xlu0 %675
        %677 = vrot.lane.b32.xlu0 %v241, 15
        %v678 = vpop.permute.xlu0 %677
        %vm679 = vcmp.lt.s32.totalorder %v247, 15
        %v680 = vsel %vm679, %v676, %v678
        %v681 = vsel %vm679, %v678, %v676
        %s682 = scalar_lea.vmem [#allocation3], 72
        %v683 = vld [vmem:[%s682] sm:$0xf]
        %v686 = vunpack.c.l.s4 1983009808
        %v687 = vunpack.c.0.s8 %v686
        %v688 = vlaneseq
        %v689 = vshrl.u32 %v688, 7
        %v690 = vsub.s32 %v687, %v689
        %v691 = vrot.slane %v683, %v690
        %v692 = vcombine.high %v691, %v691
        %v695 = vmul.f32 %v681, %v691
        %v696 = vmul.f32 %v680, %v692
        %v697 = vadd.f32 %v601, %v695
        %v698 = vadd.f32 %v602, %v696
        %699 = vrot.lane.b32.xlu0 %v240, 14
        %v700 = vpop.permute.xlu0 %699
        %701 = vrot.lane.b32.xlu0 %v241, 14
        %v702 = vpop.permute.xlu0 %701
        %vm703 = vcmp.lt.s32.totalorder %v247, 14
        %v704 = vsel %vm703, %v700, %v702
        %v705 = vsel %vm703, %v702, %v700
        %s706 = scalar_lea.vmem [#allocation3], 76
        %v707 = vld [vmem:[%s706] sm:$0xf]
        %v710 = vunpack.c.l.s4 1983009808
        %v711 = vunpack.c.0.s8 %v710
        %v712 = vlaneseq
        %v713 = vshrl.u32 %v712, 7
        %v714 = vsub.s32 %v711, %v713
        %v715 = vrot.slane %v707, %v714
        %v716 = vcombine.high %v715, %v715
        %v719 = vmul.f32 %v705, %v715
        %v720 = vmul.f32 %v704, %v716
        %v721 = vadd.f32 %v625, %v719
        %v722 = vadd.f32 %v626, %v720
        %723 = vrot.lane.b32.xlu0 %v240, 13
        %v724 = vpop.permute.xlu0 %723
        %725 = vrot.lane.b32.xlu0 %v241, 13
        %v726 = vpop.permute.xlu0 %725
        %vm727 = vcmp.lt.s32.totalorder %v247, 13
        %v728 = vsel %vm727, %v724, %v726
        %v729 = vsel %vm727, %v726, %v724
        %s730 = scalar_lea.vmem [#allocation3], 80
        %v731 = vld [vmem:[%s730] sm:$0xf]
        %v734 = vunpack.c.l.s4 1983009808
        %v735 = vunpack.c.0.s8 %v734
        %v736 = vlaneseq
        %v737 = vshrl.u32 %v736, 7
        %v738 = vsub.s32 %v735, %v737
        %v739 = vrot.slane %v731, %v738
        %v740 = vcombine.high %v739, %v739
        %v743 = vmul.f32 %v729, %v739
        %v744 = vmul.f32 %v728, %v740
        %v745 = vadd.f32 %v649, %v743
        %v746 = vadd.f32 %v650, %v744
        %747 = vrot.lane.b32.xlu0 %v240, 3
        %v748 = vpop.permute.xlu0 %747
        %749 = vrot.lane.b32.xlu0 %v241, 3
        %v750 = vpop.permute.xlu0 %749
        %vm751 = vcmp.lt.s32.totalorder %v247, 3
        %v752 = vsel %vm751, %v748, %v750
        %v753 = vsel %vm751, %v750, %v748
        %s754 = scalar_lea.vmem [#allocation3], 84
        %v755 = vld [vmem:[%s754] sm:$0xf]
        %v758 = vunpack.c.l.s4 1983009808
        %v759 = vunpack.c.0.s8 %v758
        %v760 = vlaneseq
        %v761 = vshrl.u32 %v760, 7
        %v762 = vsub.s32 %v759, %v761
        %v763 = vrot.slane %v755, %v762
        %v764 = vcombine.high %v763, %v763
        %v767 = vmul.f32 %v753, %v763
        %v768 = vmul.f32 %v752, %v764
        %v769 = vadd.f32 %v673, %v767
        %v770 = vadd.f32 %v674, %v768
        %771 = vrot.lane.b32.xlu0 %v240, 2
        %v772 = vpop.permute.xlu0 %771
        %773 = vrot.lane.b32.xlu0 %v241, 2
        %v774 = vpop.permute.xlu0 %773
        %vm775 = vcmp.lt.s32.totalorder %v247, 2
        %v776 = vsel %vm775, %v772, %v774
        %v777 = vsel %vm775, %v774, %v772
        %s778 = scalar_lea.vmem [#allocation3], 88
        %v779 = vld [vmem:[%s778] sm:$0xf]
        %v782 = vunpack.c.l.s4 1983009808
        %v783 = vunpack.c.0.s8 %v782
        %v784 = vlaneseq
        %v785 = vshrl.u32 %v784, 7
        %v786 = vsub.s32 %v783, %v785
        %v787 = vrot.slane %v779, %v786
        %v788 = vcombine.high %v787, %v787
        %v791 = vmul.f32 %v777, %v787
        %v792 = vmul.f32 %v776, %v788
        %v793 = vadd.f32 %v697, %v791
        %v794 = vadd.f32 %v698, %v792
        %795 = vrot.lane.b32.xlu0 %v240, 1
        %v796 = vpop.permute.xlu0 %795
        %797 = vrot.lane.b32.xlu0 %v241, 1
        %v798 = vpop.permute.xlu0 %797
        %vm799 = vcmp.lt.s32.totalorder %v247, 1
        %v800 = vsel %vm799, %v796, %v798
        %v801 = vsel %vm799, %v798, %v796
        %s802 = scalar_lea.vmem [#allocation3], 92
        %v803 = vld [vmem:[%s802] sm:$0xf]
        %v806 = vunpack.c.l.s4 1983009808
        %v807 = vunpack.c.0.s8 %v806
        %v808 = vlaneseq
        %v809 = vshrl.u32 %v808, 7
        %v810 = vsub.s32 %v807, %v809
        %v811 = vrot.slane %v803, %v810
        %v812 = vcombine.high %v811, %v811
        %v815 = vmul.f32 %v801, %v811
        %v816 = vmul.f32 %v800, %v812
        %v817 = vadd.f32 %v721, %v815
        %v818 = vadd.f32 %v722, %v816
        %s819 = scalar_lea.vmem [#allocation3], 96
        %v820 = vld [vmem:[%s819] sm:$0xf]
        %v823 = vunpack.c.l.s4 1983009808
        %v824 = vunpack.c.0.s8 %v823
        %v825 = vlaneseq
        %v826 = vshrl.u32 %v825, 7
        %v827 = vsub.s32 %v824, %v826
        %v828 = vrot.slane %v820, %v827
        %v829 = vcombine.high %v828, %v828
        %v832 = vmul.f32 %v240, %v828
        %v833 = vmul.f32 %v241, %v829
        %v834 = vadd.f32 %v745, %v832
        %v835 = vadd.f32 %v746, %v833
        %836 = vrot.lane.b32.xlu0 %v240, 127
        %v837 = vpop.permute.xlu0 %836
        %838 = vrot.lane.b32.xlu0 %v241, 127
        %v839 = vpop.permute.xlu0 %838
        %vm840 = vcmp.lt.s32.totalorder %v247, 127
        %v841 = vsel %vm840, %v837, %v839
        %v842 = vsel %vm840, %v839, %v837
        %s843 = scalar_lea.vmem [#allocation3], 100
        %v844 = vld [vmem:[%s843] sm:$0xf]
        %v847 = vunpack.c.l.s4 1983009808
        %v848 = vunpack.c.0.s8 %v847
        %v849 = vlaneseq
        %v850 = vshrl.u32 %v849, 7
        %v851 = vsub.s32 %v848, %v850
        %v852 = vrot.slane %v844, %v851
        %v853 = vcombine.high %v852, %v852
        %v856 = vmul.f32 %v841, %v852
        %v857 = vmul.f32 %v842, %v853
        %v858 = vadd.f32 %v769, %v856
        %v859 = vadd.f32 %v770, %v857
        %860 = vrot.lane.b32.xlu0 %v240, 126
        %v861 = vpop.permute.xlu0 %860
        %862 = vrot.lane.b32.xlu0 %v241, 126
        %v863 = vpop.permute.xlu0 %862
        %vm864 = vcmp.lt.s32.totalorder %v247, 126
        %v865 = vsel %vm864, %v861, %v863
        %v866 = vsel %vm864, %v863, %v861
        %s867 = scalar_lea.vmem [#allocation3], 104
        %v868 = vld [vmem:[%s867] sm:$0xf]
        %v871 = vunpack.c.l.s4 1983009808
        %v872 = vunpack.c.0.s8 %v871
        %v873 = vlaneseq
        %v874 = vshrl.u32 %v873, 7
        %v875 = vsub.s32 %v872, %v874
        %v876 = vrot.slane %v868, %v875
        %v877 = vcombine.high %v876, %v876
        %v880 = vmul.f32 %v865, %v876
        %v881 = vmul.f32 %v866, %v877
        %v882 = vadd.f32 %v793, %v880
        %v883 = vadd.f32 %v794, %v881
        %884 = vrot.lane.b32.xlu0 %v240, 125
        %v885 = vpop.permute.xlu0 %884
        %886 = vrot.lane.b32.xlu0 %v241, 125
        %v887 = vpop.permute.xlu0 %886
        %vm888 = vcmp.lt.s32.totalorder %v247, 125
        %v889 = vsel %vm888, %v885, %v887
        %v890 = vsel %vm888, %v887, %v885
        %s891 = scalar_lea.vmem [#allocation3], 108
        %v892 = vld [vmem:[%s891] sm:$0xf]
        %v895 = vunpack.c.l.s4 1983009808
        %v896 = vunpack.c.0.s8 %v895
        %v897 = vlaneseq
        %v898 = vshrl.u32 %v897, 7
        %v899 = vsub.s32 %v896, %v898
        %v900 = vrot.slane %v892, %v899
        %v901 = vcombine.high %v900, %v900
        %v904 = vmul.f32 %v889, %v900
        %v905 = vmul.f32 %v890, %v901
        %v906 = vadd.f32 %v817, %v904
        %v907 = vadd.f32 %v818, %v905
        %908 = vrot.lane.b32.xlu0 %v240, 115
        %v909 = vpop.permute.xlu0 %908
        %910 = vrot.lane.b32.xlu0 %v241, 115
        %v911 = vpop.permute.xlu0 %910
        %vm912 = vcmp.lt.s32.totalorder %v247, 115
        %v913 = vsel %vm912, %v909, %v911
        %v914 = vsel %vm912, %v911, %v909
        %s915 = scalar_lea.vmem [#allocation3], 112
        %v916 = vld [vmem:[%s915] sm:$0xf]
        %v919 = vunpack.c.l.s4 1983009808
        %v920 = vunpack.c.0.s8 %v919
        %v921 = vlaneseq
        %v922 = vshrl.u32 %v921, 7
        %v923 = vsub.s32 %v920, %v922
        %v924 = vrot.slane %v916, %v923
        %v925 = vcombine.high %v924, %v924
        %v928 = vmul.f32 %v913, %v924
        %v929 = vmul.f32 %v914, %v925
        %v930 = vadd.f32 %v834, %v928
        %v931 = vadd.f32 %v835, %v929
        %932 = vrot.lane.b32.xlu0 %v240, 114
        %v933 = vpop.permute.xlu0 %932
        %934 = vrot.lane.b32.xlu0 %v241, 114
        %v935 = vpop.permute.xlu0 %934
        %vm936 = vcmp.lt.s32.totalorder %v247, 114
        %v937 = vsel %vm936, %v933, %v935
        %v938 = vsel %vm936, %v935, %v933
        %s939 = scalar_lea.vmem [#allocation3], 116
        %v940 = vld [vmem:[%s939] sm:$0xf]
        %v943 = vunpack.c.l.s4 1983009808
        %v944 = vunpack.c.0.s8 %v943
        %v945 = vlaneseq
        %v946 = vshrl.u32 %v945, 7
        %v947 = vsub.s32 %v944, %v946
        %v948 = vrot.slane %v940, %v947
        %v949 = vcombine.high %v948, %v948
        %v952 = vmul.f32 %v937, %v948
        %v953 = vmul.f32 %v938, %v949
        %v954 = vadd.f32 %v858, %v952
        %v955 = vadd.f32 %v859, %v953
        %956 = vrot.lane.b32.xlu0 %v240, 113
        %v957 = vpop.permute.xlu0 %956
        %958 = vrot.lane.b32.xlu0 %v241, 113
        %v959 = vpop.permute.xlu0 %958
        %vm960 = vcmp.lt.s32.totalorder %v247, 113
        %v961 = vsel %vm960, %v957, %v959
        %v962 = vsel %vm960, %v959, %v957
        %s963 = scalar_lea.vmem [#allocation3], 120
        %v964 = vld [vmem:[%s963] sm:$0xf]
        %v967 = vunpack.c.l.s4 1983009808
        %v968 = vunpack.c.0.s8 %v967
        %v969 = vlaneseq
        %v970 = vshrl.u32 %v969, 7
        %v971 = vsub.s32 %v968, %v970
        %v972 = vrot.slane %v964, %v971
        %v973 = vcombine.high %v972, %v972
        %v976 = vmul.f32 %v961, %v972
        %v977 = vmul.f32 %v962, %v973
        %v978 = vadd.f32 %v882, %v976
        %v979 = vadd.f32 %v883, %v977
        %980 = vrot.lane.b32.xlu0 %v240, 112
        %v981 = vpop.permute.xlu0 %980
        %982 = vrot.lane.b32.xlu0 %v241, 112
        %v983 = vpop.permute.xlu0 %982
        %vm984 = vcmp.lt.s32.totalorder %v247, 112
        %v985 = vsel %vm984, %v981, %v983
        %v986 = vsel %vm984, %v983, %v981
        %s987 = scalar_lea.vmem [#allocation3], 124
        %v988 = vld [vmem:[%s987] sm:$0xf]
        %v991 = vunpack.c.l.s4 1983009808
        %v992 = vunpack.c.0.s8 %v991
        %v993 = vlaneseq
        %v994 = vshrl.u32 %v993, 7
        %v995 = vsub.s32 %v992, %v994
        %v996 = vrot.slane %v988, %v995
        %v997 = vcombine.high %v996, %v996
        %v1000 = vmul.f32 %v985, %v996
        %v1001 = vmul.f32 %v986, %v997
        %v1002 = vadd.f32 %v906, %v1000
        %v1003 = vadd.f32 %v907, %v1001
        %1004 = vrot.lane.b32.xlu0 %v240, 111
        %v1005 = vpop.permute.xlu0 %1004
        %1006 = vrot.lane.b32.xlu0 %v241, 111
        %v1007 = vpop.permute.xlu0 %1006
        %vm1008 = vcmp.lt.s32.totalorder %v247, 111
        %v1009 = vsel %vm1008, %v1005, %v1007
        %v1010 = vsel %vm1008, %v1007, %v1005
        %s1011 = scalar_lea.vmem [#allocation3], 128
        %v1012 = vld [vmem:[%s1011] sm:$0xf]
        %v1015 = vunpack.c.l.s4 1983009808
        %v1016 = vunpack.c.0.s8 %v1015
        %v1017 = vlaneseq
        %v1018 = vshrl.u32 %v1017, 7
        %v1019 = vsub.s32 %v1016, %v1018
        %v1020 = vrot.slane %v1012, %v1019
        %v1021 = vcombine.high %v1020, %v1020
        %v1024 = vmul.f32 %v1009, %v1020
        %v1025 = vmul.f32 %v1010, %v1021
        %v1026 = vadd.f32 %v930, %v1024
        %v1027 = vadd.f32 %v931, %v1025
        %1028 = vrot.lane.b32.xlu0 %v240, 110
        %v1029 = vpop.permute.xlu0 %1028
        %1030 = vrot.lane.b32.xlu0 %v241, 110
        %v1031 = vpop.permute.xlu0 %1030
        %vm1032 = vcmp.lt.s32.totalorder %v247, 110
        %v1033 = vsel %vm1032, %v1029, %v1031
        %v1034 = vsel %vm1032, %v1031, %v1029
        %s1035 = scalar_lea.vmem [#allocation3], 132
        %v1036 = vld [vmem:[%s1035] sm:$0xf]
        %v1039 = vunpack.c.l.s4 1983009808
        %v1040 = vunpack.c.0.s8 %v1039
        %v1041 = vlaneseq
        %v1042 = vshrl.u32 %v1041, 7
        %v1043 = vsub.s32 %v1040, %v1042
        %v1044 = vrot.slane %v1036, %v1043
        %v1045 = vcombine.high %v1044, %v1044
        %v1048 = vmul.f32 %v1033, %v1044
        %v1049 = vmul.f32 %v1034, %v1045
        %v1050 = vadd.f32 %v954, %v1048
        %v1051 = vadd.f32 %v955, %v1049
        %1052 = vrot.lane.b32.xlu0 %v240, 109
        %v1053 = vpop.permute.xlu0 %1052
        %1054 = vrot.lane.b32.xlu0 %v241, 109
        %v1055 = vpop.permute.xlu0 %1054
        %vm1056 = vcmp.lt.s32.totalorder %v247, 109
        %v1057 = vsel %vm1056, %v1053, %v1055
        %v1058 = vsel %vm1056, %v1055, %v1053
        %s1059 = scalar_lea.vmem [#allocation3], 136
        %v1060 = vld [vmem:[%s1059] sm:$0xf]
        %v1063 = vunpack.c.l.s4 1983009808
        %v1064 = vunpack.c.0.s8 %v1063
        %v1065 = vlaneseq
        %v1066 = vshrl.u32 %v1065, 7
        %v1067 = vsub.s32 %v1064, %v1066
        %v1068 = vrot.slane %v1060, %v1067
        %v1069 = vcombine.high %v1068, %v1068
        %v1072 = vmul.f32 %v1057, %v1068
        %v1073 = vmul.f32 %v1058, %v1069
        %v1074 = vadd.f32 %v978, %v1072
        %v1075 = vadd.f32 %v979, %v1073
        %1076 = vrot.lane.b32.xlu0 %v240, 99
        %v1077 = vpop.permute.xlu0 %1076
        %1078 = vrot.lane.b32.xlu0 %v241, 99
        %v1079 = vpop.permute.xlu0 %1078
        %vm1080 = vcmp.lt.s32.totalorder %v247, 99
        %v1081 = vsel %vm1080, %v1077, %v1079
        %v1082 = vsel %vm1080, %v1079, %v1077
        %s1083 = scalar_lea.vmem [#allocation3], 140
        %v1084 = vld [vmem:[%s1083] sm:$0xf]
        %v1087 = vunpack.c.l.s4 1983009808
        %v1088 = vunpack.c.0.s8 %v1087
        %v1089 = vlaneseq
        %v1090 = vshrl.u32 %v1089, 7
        %v1091 = vsub.s32 %v1088, %v1090
        %v1092 = vrot.slane %v1084, %v1091
        %v1093 = vcombine.high %v1092, %v1092
        %v1096 = vmul.f32 %v1081, %v1092
        %v1097 = vmul.f32 %v1082, %v1093
        %v1098 = vadd.f32 %v1002, %v1096
        %v1099 = vadd.f32 %v1003, %v1097
        %1100 = vrot.lane.b32.xlu0 %v240, 98
        %v1101 = vpop.permute.xlu0 %1100
        %1102 = vrot.lane.b32.xlu0 %v241, 98
        %v1103 = vpop.permute.xlu0 %1102
        %vm1104 = vcmp.lt.s32.totalorder %v247, 98
        %v1105 = vsel %vm1104, %v1101, %v1103
        %v1106 = vsel %vm1104, %v1103, %v1101
        %s1107 = scalar_lea.vmem [#allocation3], 144
        %v1108 = vld [vmem:[%s1107] sm:$0xf]
        %v1111 = vunpack.c.l.s4 1983009808
        %v1112 = vunpack.c.0.s8 %v1111
        %v1113 = vlaneseq
        %v1114 = vshrl.u32 %v1113, 7
        %v1115 = vsub.s32 %v1112, %v1114
        %v1116 = vrot.slane %v1108, %v1115
        %v1117 = vcombine.high %v1116, %v1116
        %v1120 = vmul.f32 %v1105, %v1116
        %v1121 = vmul.f32 %v1106, %v1117
        %v1122 = vadd.f32 %v1026, %v1120
        %v1123 = vadd.f32 %v1027, %v1121
        %1124 = vrot.lane.b32.xlu0 %v240, 97
        %v1125 = vpop.permute.xlu0 %1124
        %1126 = vrot.lane.b32.xlu0 %v241, 97
        %v1127 = vpop.permute.xlu0 %1126
        %vm1128 = vcmp.lt.s32.totalorder %v247, 97
        %v1129 = vsel %vm1128, %v1125, %v1127
        %v1130 = vsel %vm1128, %v1127, %v1125
        %s1131 = scalar_lea.vmem [#allocation3], 148
        %v1132 = vld [vmem:[%s1131] sm:$0xf]
        %v1135 = vunpack.c.l.s4 1983009808
        %v1136 = vunpack.c.0.s8 %v1135
        %v1137 = vlaneseq
        %v1138 = vshrl.u32 %v1137, 7
        %v1139 = vsub.s32 %v1136, %v1138
        %v1140 = vrot.slane %v1132, %v1139
        %v1141 = vcombine.high %v1140, %v1140
        %v1144 = vmul.f32 %v1129, %v1140
        %v1145 = vmul.f32 %v1130, %v1141
        %v1146 = vadd.f32 %v1050, %v1144
        %v1147 = vadd.f32 %v1051, %v1145
        %1148 = vrot.lane.b32.xlu0 %v240, 96
        %v1149 = vpop.permute.xlu0 %1148
        %1150 = vrot.lane.b32.xlu0 %v241, 96
        %v1151 = vpop.permute.xlu0 %1150
        %vm1152 = vcmp.lt.s32.totalorder %v247, 96
        %v1153 = vsel %vm1152, %v1149, %v1151
        %v1154 = vsel %vm1152, %v1151, %v1149
        %s1155 = scalar_lea.vmem [#allocation3], 152
        %v1156 = vld [vmem:[%s1155] sm:$0xf]
        %v1159 = vunpack.c.l.s4 1983009808
        %v1160 = vunpack.c.0.s8 %v1159
        %v1161 = vlaneseq
        %v1162 = vshrl.u32 %v1161, 7
        %v1163 = vsub.s32 %v1160, %v1162
        %v1164 = vrot.slane %v1156, %v1163
        %v1165 = vcombine.high %v1164, %v1164
        %v1168 = vmul.f32 %v1153, %v1164
        %v1169 = vmul.f32 %v1154, %v1165
        %v1170 = vadd.f32 %v1074, %v1168
        %v1171 = vadd.f32 %v1075, %v1169
        %1172 = vrot.lane.b32.xlu0 %v240, 95
        %v1173 = vpop.permute.xlu0 %1172
        %1174 = vrot.lane.b32.xlu0 %v241, 95
        %v1175 = vpop.permute.xlu0 %1174
        %vm1176 = vcmp.lt.s32.totalorder %v247, 95
        %v1177 = vsel %vm1176, %v1173, %v1175
        %v1178 = vsel %vm1176, %v1175, %v1173
        %s1179 = scalar_lea.vmem [#allocation3], 156
        %v1180 = vld [vmem:[%s1179] sm:$0xf]
        %v1183 = vunpack.c.l.s4 1983009808
        %v1184 = vunpack.c.0.s8 %v1183
        %v1185 = vlaneseq
        %v1186 = vshrl.u32 %v1185, 7
        %v1187 = vsub.s32 %v1184, %v1186
        %v1188 = vrot.slane %v1180, %v1187
        %v1189 = vcombine.high %v1188, %v1188
        %v1192 = vmul.f32 %v1177, %v1188
        %v1193 = vmul.f32 %v1178, %v1189
        %v1194 = vadd.f32 %v1098, %v1192
        %v1195 = vadd.f32 %v1099, %v1193
        %1196 = vrot.lane.b32.xlu0 %v240, 94
        %v1197 = vpop.permute.xlu0 %1196
        %1198 = vrot.lane.b32.xlu0 %v241, 94
        %v1199 = vpop.permute.xlu0 %1198
        %vm1200 = vcmp.lt.s32.totalorder %v247, 94
        %v1201 = vsel %vm1200, %v1197, %v1199
        %v1202 = vsel %vm1200, %v1199, %v1197
        %s1203 = scalar_lea.vmem [#allocation3], 160
        %v1204 = vld [vmem:[%s1203] sm:$0xf]
        %v1207 = vunpack.c.l.s4 1983009808
        %v1208 = vunpack.c.0.s8 %v1207
        %v1209 = vlaneseq
        %v1210 = vshrl.u32 %v1209, 7
        %v1211 = vsub.s32 %v1208, %v1210
        %v1212 = vrot.slane %v1204, %v1211
        %v1213 = vcombine.high %v1212, %v1212
        %v1216 = vmul.f32 %v1201, %v1212
        %v1217 = vmul.f32 %v1202, %v1213
        %v1218 = vadd.f32 %v1122, %v1216
        %v1219 = vadd.f32 %v1123, %v1217
        %1220 = vrot.lane.b32.xlu0 %v240, 93
        %v1221 = vpop.permute.xlu0 %1220
        %1222 = vrot.lane.b32.xlu0 %v241, 93
        %v1223 = vpop.permute.xlu0 %1222
        %vm1224 = vcmp.lt.s32.totalorder %v247, 93
        %v1225 = vsel %vm1224, %v1221, %v1223
        %v1226 = vsel %vm1224, %v1223, %v1221
        %s1227 = scalar_lea.vmem [#allocation3], 164
        %v1228 = vld [vmem:[%s1227] sm:$0xf]
        %v1231 = vunpack.c.l.s4 1983009808
        %v1232 = vunpack.c.0.s8 %v1231
        %v1233 = vlaneseq
        %v1234 = vshrl.u32 %v1233, 7
        %v1235 = vsub.s32 %v1232, %v1234
        %v1236 = vrot.slane %v1228, %v1235
        %v1237 = vcombine.high %v1236, %v1236
        %v1240 = vmul.f32 %v1225, %v1236
        %v1241 = vmul.f32 %v1226, %v1237
        %v1242 = vadd.f32 %v1146, %v1240
        %v1243 = vadd.f32 %v1147, %v1241
        %1244 = vrot.lane.b32.xlu0 %v240, 83
        %v1245 = vpop.permute.xlu0 %1244
        %1246 = vrot.lane.b32.xlu0 %v241, 83
        %v1247 = vpop.permute.xlu0 %1246
        %vm1248 = vcmp.lt.s32.totalorder %v247, 83
        %v1249 = vsel %vm1248, %v1245, %v1247
        %v1250 = vsel %vm1248, %v1247, %v1245
        %s1251 = scalar_lea.vmem [#allocation3], 168
        %v1252 = vld [vmem:[%s1251] sm:$0xf]
        %v1255 = vunpack.c.l.s4 1983009808
        %v1256 = vunpack.c.0.s8 %v1255
        %v1257 = vlaneseq
        %v1258 = vshrl.u32 %v1257, 7
        %v1259 = vsub.s32 %v1256, %v1258
        %v1260 = vrot.slane %v1252, %v1259
        %v1261 = vcombine.high %v1260, %v1260
        %v1264 = vmul.f32 %v1249, %v1260
        %v1265 = vmul.f32 %v1250, %v1261
        %v1266 = vadd.f32 %v1170, %v1264
        %v1267 = vadd.f32 %v1171, %v1265
        %1268 = vrot.lane.b32.xlu0 %v240, 82
        %v1269 = vpop.permute.xlu0 %1268
        %1270 = vrot.lane.b32.xlu0 %v241, 82
        %v1271 = vpop.permute.xlu0 %1270
        %vm1272 = vcmp.lt.s32.totalorder %v247, 82
        %v1273 = vsel %vm1272, %v1269, %v1271
        %v1274 = vsel %vm1272, %v1271, %v1269
        %s1275 = scalar_lea.vmem [#allocation3], 172
        %v1276 = vld [vmem:[%s1275] sm:$0xf]
        %v1279 = vunpack.c.l.s4 1983009808
        %v1280 = vunpack.c.0.s8 %v1279
        %v1281 = vlaneseq
        %v1282 = vshrl.u32 %v1281, 7
        %v1283 = vsub.s32 %v1280, %v1282
        %v1284 = vrot.slane %v1276, %v1283
        %v1285 = vcombine.high %v1284, %v1284
        %v1288 = vmul.f32 %v1273, %v1284
        %v1289 = vmul.f32 %v1274, %v1285
        %v1290 = vadd.f32 %v1194, %v1288
        %v1291 = vadd.f32 %v1195, %v1289
        %1292 = vrot.lane.b32.xlu0 %v240, 81
        %v1293 = vpop.permute.xlu0 %1292
        %1294 = vrot.lane.b32.xlu0 %v241, 81
        %v1295 = vpop.permute.xlu0 %1294
        %vm1296 = vcmp.lt.s32.totalorder %v247, 81
        %v1297 = vsel %vm1296, %v1293, %v1295
        %v1298 = vsel %vm1296, %v1295, %v1293
        %s1299 = scalar_lea.vmem [#allocation3], 176
        %v1300 = vld [vmem:[%s1299] sm:$0xf]
        %v1303 = vunpack.c.l.s4 1983009808
        %v1304 = vunpack.c.0.s8 %v1303
        %v1305 = vlaneseq
        %v1306 = vshrl.u32 %v1305, 7
        %v1307 = vsub.s32 %v1304, %v1306
        %v1308 = vrot.slane %v1300, %v1307
        %v1309 = vcombine.high %v1308, %v1308
        %v1312 = vmul.f32 %v1297, %v1308
        %v1313 = vmul.f32 %v1298, %v1309
        %v1314 = vadd.f32 %v1218, %v1312
        %v1315 = vadd.f32 %v1219, %v1313
        %1316 = vrot.lane.b32.xlu0 %v240, 80
        %v1317 = vpop.permute.xlu0 %1316
        %1318 = vrot.lane.b32.xlu0 %v241, 80
        %v1319 = vpop.permute.xlu0 %1318
        %vm1320 = vcmp.lt.s32.totalorder %v247, 80
        %v1321 = vsel %vm1320, %v1317, %v1319
        %v1322 = vsel %vm1320, %v1319, %v1317
        %s1323 = scalar_lea.vmem [#allocation3], 180
        %v1324 = vld [vmem:[%s1323] sm:$0xf]
        %v1327 = vunpack.c.l.s4 1983009808
        %v1328 = vunpack.c.0.s8 %v1327
        %v1329 = vlaneseq
        %v1330 = vshrl.u32 %v1329, 7
        %v1331 = vsub.s32 %v1328, %v1330
        %v1332 = vrot.slane %v1324, %v1331
        %v1333 = vcombine.high %v1332, %v1332
        %v1336 = vmul.f32 %v1321, %v1332
        %v1337 = vmul.f32 %v1322, %v1333
        %v1338 = vadd.f32 %v1242, %v1336
        %v1339 = vadd.f32 %v1243, %v1337
        %1340 = vrot.lane.b32.xlu0 %v240, 79
        %v1341 = vpop.permute.xlu0 %1340
        %1342 = vrot.lane.b32.xlu0 %v241, 79
        %v1343 = vpop.permute.xlu0 %1342
        %vm1344 = vcmp.lt.s32.totalorder %v247, 79
        %v1345 = vsel %vm1344, %v1341, %v1343
        %v1346 = vsel %vm1344, %v1343, %v1341
        %s1347 = scalar_lea.vmem [#allocation3], 184
        %v1348 = vld [vmem:[%s1347] sm:$0xf]
        %v1351 = vunpack.c.l.s4 1983009808
        %v1352 = vunpack.c.0.s8 %v1351
        %v1353 = vlaneseq
        %v1354 = vshrl.u32 %v1353, 7
        %v1355 = vsub.s32 %v1352, %v1354
        %v1356 = vrot.slane %v1348, %v1355
        %v1357 = vcombine.high %v1356, %v1356
        %v1360 = vmul.f32 %v1345, %v1356
        %v1361 = vmul.f32 %v1346, %v1357
        %v1362 = vadd.f32 %v1266, %v1360
        %v1363 = vadd.f32 %v1267, %v1361
        %1364 = vrot.lane.b32.xlu0 %v240, 78
        %v1365 = vpop.permute.xlu0 %1364
        %1366 = vrot.lane.b32.xlu0 %v241, 78
        %v1367 = vpop.permute.xlu0 %1366
        %vm1368 = vcmp.lt.s32.totalorder %v247, 78
        %v1369 = vsel %vm1368, %v1365, %v1367
        %v1370 = vsel %vm1368, %v1367, %v1365
        %s1371 = scalar_lea.vmem [#allocation3], 188
        %v1372 = vld [vmem:[%s1371] sm:$0xf]
        %v1375 = vunpack.c.l.s4 1983009808
        %v1376 = vunpack.c.0.s8 %v1375
        %v1377 = vlaneseq
        %v1378 = vshrl.u32 %v1377, 7
        %v1379 = vsub.s32 %v1376, %v1378
        %v1380 = vrot.slane %v1372, %v1379
        %v1381 = vcombine.high %v1380, %v1380
        %v1384 = vmul.f32 %v1369, %v1380
        %v1385 = vmul.f32 %v1370, %v1381
        %v1386 = vadd.f32 %v1290, %v1384
        %v1387 = vadd.f32 %v1291, %v1385
        %1388 = vrot.lane.b32.xlu0 %v240, 77
        %v1389 = vpop.permute.xlu0 %1388
        %1390 = vrot.lane.b32.xlu0 %v241, 77
        %v1391 = vpop.permute.xlu0 %1390
        %vm1392 = vcmp.lt.s32.totalorder %v247, 77
        %v1393 = vsel %vm1392, %v1389, %v1391
        %v1394 = vsel %vm1392, %v1391, %v1389
        %s1395 = scalar_lea.vmem [#allocation3], 192
        %v1396 = vld [vmem:[%s1395] sm:$0xf]
        %v1399 = vunpack.c.l.s4 1983009808
        %v1400 = vunpack.c.0.s8 %v1399
        %v1401 = vlaneseq
        %v1402 = vshrl.u32 %v1401, 7
        %v1403 = vsub.s32 %v1400, %v1402
        %v1404 = vrot.slane %v1396, %v1403
        %v1405 = vcombine.high %v1404, %v1404
        %v1408 = vmul.f32 %v1393, %v1404
        %v1409 = vmul.f32 %v1394, %v1405
        %v1410 = vadd.f32 %v1314, %v1408
        %v1411 = vadd.f32 %v1315, %v1409
        %v1412 = vadd.f32 %v1410, %v1338
        %v1413 = vadd.f32 %v1411, %v1339
        %v1414 = vadd.f32 %v1362, %v1386
        %v1415 = vadd.f32 %v1363, %v1387
        %v1416 = vadd.f32 %v1412, %v1414
        %v1417 = vadd.f32 %v1413, %v1415
        %vm1418 = vcmask 1041408
        %v1419 = vsel %vm1418, %v1416, 0.0
        %v1420 = vrot.slane %v1419, 4
        %v1421 = vadd.f32 %v1419, %v1420
        %v1422 = vrot.slane %v1421, 2
        %v1423 = vadd.f32 %v1421, %v1422
        %v1424 = vrot.slane %v1423, 1
        %v1425 = vadd.f32 %v1423, %v1424
        %v1426 = vsel %vm1418, %v1417, 0.0
        %v1427 = vrot.slane %v1426, 4
        %v1428 = vadd.f32 %v1426, %v1427
        %v1429 = vrot.slane %v1428, 2
        %v1430 = vadd.f32 %v1428, %v1429
        %v1431 = vrot.slane %v1430, 1
        %v1432 = vadd.f32 %v1430, %v1431
        %v1433 = vstv %s203
        %v1434 = vadd.f32 %v1425, %v1433
        %v1435 = vadd.f32 %v1432, %v1433
        %v1436 = vsub.f32 0.0, %v1434
        %v1437 = vsub.f32 0.0, %v1435
        %v1438 = vmul.f32 %v1436, 1.442695
        %v1439 = vpow.pop %v1438
        %v1440 = vmul.f32 %v1437, 1.442695
        %v1441 = vpow.pop %v1440
        %v1442 = vadd.f32 %v1439, 1.0
        %v1443 = vadd.f32 %v1441, 1.0
        %v1444 = vrcp.pop %v1442
        %v1445 = vmul.f32 1.0, %v1444
        %v1446 = vrcp.pop %v1443
        %v1447 = vmul.f32 1.0, %v1446
        %v1450 = vcombine.low %v1445, %v1447
        %v1452 = vmul.f32 %v204, %v1450
        %1453 = vst [vmem:[%s202] sm:$0xff] %v1452
        %s1454 = sand.u32 %s98, 1
        %s1455 = scalar_lea.sflag [#allocation5], %s1454
        %s1456 = sand.u32 %s98, 1
        %s1457 = smul.addr %s1456, 8
        %s1458 = scalar_lea.vmem [#allocation8], %s1457
        // Predicated region
        $region41: #{tpu_custom_call.1} parent=31 // pred_check
          %p1459 = pneg %p108
        $region42: #{tpu_custom_call.1} parent=31 // pred_check_branch
          %1461 = sbr.rel (%p1459) target = $region44
        $region43: #{tpu_custom_call.1} parent=31 // pred_region
          %s1463 = ssub.s32 128, 128
          %1464 = vsyncadd %s1455, %s1463
          %s1465 = smul.addr %s22, 2
          %s1466 = smul.addr %s1465, 64
          %s1467 = scalar_lea.hbm %s3, %s1466
          %s1469 = sshll.u32 %s1458, 4
          %s1470 = int_to_ptr.vmem [resolvable:$true] %s1469
          %1472 = dma.vmem_to_hbm [thread:$0]  %s1470, 128, %s1467, %s1455
        $region44: #{tpu_custom_call.1} parent=31 // pred_fallthru
          _
      $region32: #{tpu_custom_call.1} parent=5 // pred_fallthru
        _
      %p1473 = scmp.le.s32.totalorder 2, %s17
      // Predicated region
      $region45: #{tpu_custom_call.1} parent=5 // pred_check
        %p1474 = pneg %p1473
      $region46: #{tpu_custom_call.1} parent=5 // pred_check_branch
        %1476 = sbr.rel (%p1474) target = $region48
      $region47: #{tpu_custom_call.1} parent=5 // pred_region
        %s1477 = ssub.s32 %s17, 2
        // Predicated region
        $region49: #{tpu_custom_call.1} parent=47 // pred_check
          %p1478 = pneg %p114
        $region50: #{tpu_custom_call.1} parent=47 // pred_check_branch
          %1480 = sbr.rel (%p1478) target = $region52
        $region51: #{tpu_custom_call.1} parent=47 // pred_region
          %s1481 = sand.u32 %s99, 1
          %s1482 = scalar_lea.sflag [#allocation5], %s1481
          %s1483 = sand.u32 %s99, 1
          %s1484 = smul.addr %s1483, 8
          %s1485 = scalar_lea.vmem [#allocation8], %s1484
          %1486 = dma.done %s1482, 128
        $region52: #{tpu_custom_call.1} parent=47 // pred_fallthru
          _
      $region48: #{tpu_custom_call.1} parent=5 // pred_fallthru
        _
    $region6: #{tpu_custom_call.1} parent=1 // loop_footer
      %s21 = sadd.s32 1, %s17
    $region7: #{tpu_custom_call.1} parent=1 // loop_footer_branch
      %16 = sbr.rel target = $region3
    $region8: #{tpu_custom_call.1} parent=1 // loop_exit
      _
    %1487 = vsyncpa [#allocation4], 1
    %s1488 = scalar_lea.sflag [#allocation4], 1
    %1489 = vsyncpa %s1488, 1
    %1490 = vsyncpa [#allocation7], 1
    %s1491 = scalar_lea.sflag [#allocation7], 1
    %1492 = vsyncpa %s1491, 1
    %1493 = vsyncpa [#allocation5], 1
    %s1494 = scalar_lea.sflag [#allocation5], 1
    %1495 = vsyncpa %s1494, 1

</llo_original>
